<compile_context>
chip_gen: v6e
topology: v6e:2x2x1
jax: 0.10.0
libtpu: 0.0.40
codegen_flags: <defaults>
</compile_context>

<pallas_src>
import functools

import jax
import jax.numpy as jnp
from jax.experimental import pallas as pl
from jax.experimental.pallas import tpu as pltpu


# ----------------------------------------------------------------------------
# Pallas kernel: fused (in-kernel im2col + bf16 matmul + folded-BN FMA + act)
# ----------------------------------------------------------------------------
def _convblock_kernel(x_ref, w_ref, sc_ref, sh_ref, o_ref, *, kh, kw, ho, wo, act):
    # x_ref : (1, Hp, Wp, Cin)        spatially pre-padded NHWC image (f32)
    # w_ref : (K, Np)  K=kh*kw*Cin    bf16, Cout zero-padded to Np (x128 lanes)
    # sc/sh : (1, Np)                 folded bias+BN scale / shift (f32)
    # o_ref : (1, Ho*Wo, Np)          f32, lane-dense
    x = x_ref[0]                                        # (Hp, Wp, Cin)

    # im2col in VMEM: kh*kw shifted windows, concatenated along channels.
    taps = []
    for i in range(kh):
        for j in range(kw):
            taps.append(x[i:i + ho, j:j + wo, :])       # (Ho, Wo, Cin)
    xcol = jnp.concatenate(taps, axis=-1)               # (Ho, Wo, K)
    xmat = xcol.reshape(ho * wo, kh * kw * x.shape[-1]) # (M, K) collapse rows
    xmat = xmat.astype(jnp.bfloat16)

    acc = jnp.dot(xmat, w_ref[...], preferred_element_type=jnp.float32)  # (M, Np)

    # Single FMA epilogue: conv bias + inference BatchNorm folded into scale/shift.
    y = acc * sc_ref[...] + sh_ref[...]
    if act == "relu":
        y = jnp.maximum(y, 0.0)
    elif act == "sigmoid":
        y = jax.nn.sigmoid(y)
    o_ref[0, :, :] = y


# ----------------------------------------------------------------------------
# Wrapper: layout prep (NHWC, lane padding, bias/BN folding) + pallas_call
# ----------------------------------------------------------------------------
def conv_block_forward(x, w, b, gamma, beta, running_mean, running_var,
                       *, padding=0, eps=1e-5, act="relu"):
    """PyTorch ConvBlock forward: act(BN(Conv2d(x, w, b)))  (inference-mode BN).

    x: (N, Cin, H, W) f32, w: (Cout, Cin, kh, kw), stride=1, dilation=1.
    Returns (N, Cout, Ho, Wo) f32.
    """
    n, cin, h, wd = x.shape
    cout, cin_w, kh, kw = w.shape
    assert cin == cin_w
    hp, wp = h + 2 * padding, wd + 2 * padding
    ho, wo = hp - (kh - 1), wp - (kw - 1)
    k = cin * kh * kw
    npad = ((cout + 127) // 128) * 128          # lane-dense output channels
    m = ho * wo

    # NHWC activations (channels on lanes); spatial zero-pad done once (small).
    x_nhwc = jnp.transpose(x, (0, 2, 3, 1))
    if padding > 0:
        x_nhwc = jnp.pad(
            x_nhwc, ((0, 0), (padding, padding), (padding, padding), (0, 0)))
    x_nhwc = x_nhwc.astype(jnp.float32)

    # Weight as (kh, kw, Cin, Cout) so columns match the in-kernel tap order
    # (i, j, c); pad Cout -> Np and cast to bf16 for the MXU.
    wmat = jnp.transpose(w, (2, 3, 1, 0)).reshape(k, cout)
    wmat = jnp.pad(wmat, ((0, 0), (0, npad - cout))).astype(jnp.bfloat16)

    # Fold conv bias + inference BatchNorm into one FMA: y = acc*scale + shift.
    scale = gamma / jnp.sqrt(running_var + eps)
    shift = (b - running_mean) * scale + beta
    scale = jnp.pad(scale, (0, npad - cout)).reshape(1, npad).astype(jnp.float32)
    shift = jnp.pad(shift, (0, npad - cout)).reshape(1, npad).astype(jnp.float32)

    out = pl.pallas_call(
        functools.partial(_convblock_kernel, kh=kh, kw=kw, ho=ho, wo=wo, act=act),
        out_shape=jax.ShapeDtypeStruct((n, m, npad), jnp.float32),
        grid=(n,),
        in_specs=[
            pl.BlockSpec((1, hp, wp, cin), lambda i: (i, 0, 0, 0)),
            pl.BlockSpec((k, npad), lambda i: (0, 0)),
            pl.BlockSpec((1, npad), lambda i: (0, 0)),
            pl.BlockSpec((1, npad), lambda i: (0, 0)),
        ],
        out_specs=pl.BlockSpec((1, m, npad), lambda i: (i, 0, 0)),
        compiler_params=pltpu.CompilerParams(
            dimension_semantics=("parallel",)),
    )(x_nhwc, wmat, scale, shift)

    out = out[:, :, :cout].reshape(n, ho, wo, cout)
    return jnp.transpose(out, (0, 3, 1, 2))     # back to NCHW (PyTorch layout)


# ----------------------------------------------------------------------------
# Pure-JAX reference (PyTorch semantics, f32) for correctness checking
# ----------------------------------------------------------------------------
def ref_conv_block(x, w, b, gamma, beta, mean, var, padding, eps=1e-5):
    y = jax.lax.conv_general_dilated(
        x, w, window_strides=(1, 1),
        padding=[(padding, padding), (padding, padding)],
        dimension_numbers=("NCHW", "OIHW", "NCHW"))
    y = y + b[None, :, None, None]
    s = (gamma / jnp.sqrt(var + eps))[None, :, None, None]
    y = (y - mean[None, :, None, None]) * s + beta[None, :, None, None]
    return jnp.maximum(y, 0.0)


# ----------------------------------------------------------------------------
# Demo
# ----------------------------------------------------------------------------
if __name__ == "__main__":
    key = jax.random.PRNGKey(0)
    ks = jax.random.split(key, 7)

    N, Cin, H, W = 2, 4, 16, 16
    Cout, ksize, pad = 8, 3, 1

    x = jax.random.uniform(ks[0], (N, Cin, H, W), jnp.float32)
    w = 0.1 * jax.random.normal(ks[1], (Cout, Cin, ksize, ksize), jnp.float32)
    b = 0.05 * jax.random.normal(ks[2], (Cout,), jnp.float32)
    gamma = 1.0 + 0.1 * jax.random.normal(ks[3], (Cout,), jnp.float32)
    beta = 0.05 * jax.random.normal(ks[4], (Cout,), jnp.float32)
    running_mean = 0.1 * jax.random.normal(ks[5], (Cout,), jnp.float32)
    running_var = jax.random.uniform(ks[6], (Cout,), jnp.float32, 0.5, 1.5)

    fwd = jax.jit(functools.partial(conv_block_forward, padding=pad, act="relu"))
    y = fwd(x, w, b, gamma, beta, running_mean, running_var)
    jax.block_until_ready(y)

    y_ref = ref_conv_block(x, w, b, gamma, beta, running_mean, running_var, pad)

    assert y.shape == (N, Cout, H, W)
    assert bool(jnp.all(jnp.isfinite(y)))
    max_err = float(jnp.max(jnp.abs(y - y_ref)))
    assert bool(jnp.allclose(y, y_ref, rtol=5e-2, atol=5e-2)), max_err
    print("KERNEL_OK")
</pallas_src>

<mosaic_0001>
module attributes {stable_mosaic.version = 11 : i64} {
  func.func @_convblock_kernel(%arg0: i32, %arg1: memref<1x18x18x4xf32, #tpu.memory_space<vmem>>, %arg2: memref<36x128xbf16, #tpu.memory_space<vmem>>, %arg3: memref<1x128xf32, #tpu.memory_space<vmem>>, %arg4: memref<1x128xf32, #tpu.memory_space<vmem>>, %arg5: memref<1x256x128xf32, #tpu.memory_space<vmem>>) attributes {dimension_semantics = [#tpu.dimension_semantics<parallel>], iteration_bounds = array<i64: 2>, scalar_prefetch = 0 : i64, scratch_operands = 0 : i64, tpu.core_type = #tpu.core_type<tc>, window_params = [{transform_indices = @transform_0, window_bounds = array<i64: 1, 18, 18, 4>}, {pipeline_mode = #tpu.pipeline_mode<synchronous>, transform_indices = @transform_1, window_bounds = array<i64: 36, 128>}, {pipeline_mode = #tpu.pipeline_mode<synchronous>, transform_indices = @transform_2, window_bounds = array<i64: 1, 128>}, {pipeline_mode = #tpu.pipeline_mode<synchronous>, transform_indices = @transform_3, window_bounds = array<i64: 1, 128>}, {transform_indices = @transform_4, window_bounds = array<i64: 1, 256, 128>}]} {
    %c0 = arith.constant 0 : index
    %c0_0 = arith.constant 0 : index
    %c0_1 = arith.constant 0 : index
    %c0_2 = arith.constant 0 : index
    %0 = vector.load %arg1[%c0, %c0_0, %c0_1, %c0_2] : memref<1x18x18x4xf32, #tpu.memory_space<vmem>>, vector<1x18x18x4xf32>
    %1 = vector.shape_cast %0 : vector<1x18x18x4xf32> to vector<18x18x4xf32>
    %2 = vector.extract_strided_slice %1 {offsets = [0, 0, 0], sizes = [16, 16, 4], strides = [1, 1, 1]} : vector<18x18x4xf32> to vector<16x16x4xf32>
    %3 = vector.extract_strided_slice %1 {offsets = [0, 1, 0], sizes = [16, 16, 4], strides = [1, 1, 1]} : vector<18x18x4xf32> to vector<16x16x4xf32>
    %4 = vector.extract_strided_slice %1 {offsets = [0, 2, 0], sizes = [16, 16, 4], strides = [1, 1, 1]} : vector<18x18x4xf32> to vector<16x16x4xf32>
    %5 = vector.extract_strided_slice %1 {offsets = [1, 0, 0], sizes = [16, 16, 4], strides = [1, 1, 1]} : vector<18x18x4xf32> to vector<16x16x4xf32>
    %6 = vector.extract_strided_slice %1 {offsets = [1, 1, 0], sizes = [16, 16, 4], strides = [1, 1, 1]} : vector<18x18x4xf32> to vector<16x16x4xf32>
    %7 = vector.extract_strided_slice %1 {offsets = [1, 2, 0], sizes = [16, 16, 4], strides = [1, 1, 1]} : vector<18x18x4xf32> to vector<16x16x4xf32>
    %8 = vector.extract_strided_slice %1 {offsets = [2, 0, 0], sizes = [16, 16, 4], strides = [1, 1, 1]} : vector<18x18x4xf32> to vector<16x16x4xf32>
    %9 = vector.extract_strided_slice %1 {offsets = [2, 1, 0], sizes = [16, 16, 4], strides = [1, 1, 1]} : vector<18x18x4xf32> to vector<16x16x4xf32>
    %10 = vector.extract_strided_slice %1 {offsets = [2, 2, 0], sizes = [16, 16, 4], strides = [1, 1, 1]} : vector<18x18x4xf32> to vector<16x16x4xf32>
    %11 = tpu.concatenate %2, %3, %4, %5, %6, %7, %8, %9, %10 in 2 : vector<16x16x4xf32>, vector<16x16x4xf32>, vector<16x16x4xf32>, vector<16x16x4xf32>, vector<16x16x4xf32>, vector<16x16x4xf32>, vector<16x16x4xf32>, vector<16x16x4xf32>, vector<16x16x4xf32> -> vector<16x16x36xf32>
    %12 = vector.shape_cast %11 : vector<16x16x36xf32> to vector<256x36xf32>
    %13 = arith.truncf %12 : vector<256x36xf32> to vector<256x36xbf16>
    %c0_3 = arith.constant 0 : index
    %c0_4 = arith.constant 0 : index
    %14 = vector.load %arg2[%c0_3, %c0_4] : memref<36x128xbf16, #tpu.memory_space<vmem>>, vector<36x128xbf16>
    %cst = arith.constant dense<0.000000e+00> : vector<256x128xf32>
    %15 = tpu.matmul %13, %14, %cst {dimension_numbers = #tpu.dot_dimension_numbers<[1], [0], [0], [1], [0, 0, 1, 1], [], []>} : vector<256x36xbf16>, vector<36x128xbf16>, vector<256x128xf32> -> vector<256x128xf32>
    %c0_5 = arith.constant 0 : index
    %c0_6 = arith.constant 0 : index
    %16 = vector.load %arg3[%c0_5, %c0_6] : memref<1x128xf32, #tpu.memory_space<vmem>>, vector<1x128xf32>
    %17 = vector.broadcast %16 : vector<1x128xf32> to vector<256x128xf32>
    %18 = arith.mulf %15, %17 : vector<256x128xf32>
    %c0_7 = arith.constant 0 : index
    %c0_8 = arith.constant 0 : index
    %19 = vector.load %arg4[%c0_7, %c0_8] : memref<1x128xf32, #tpu.memory_space<vmem>>, vector<1x128xf32>
    %20 = vector.broadcast %19 : vector<1x128xf32> to vector<256x128xf32>
    %21 = arith.addf %18, %20 : vector<256x128xf32>
    %cst_9 = arith.constant 0.000000e+00 : f32
    %22 = vector.broadcast %cst_9 : f32 to vector<256x128xf32>
    %23 = arith.maximumf %21, %22 : vector<256x128xf32>
    %c0_10 = arith.constant 0 : index
    %c0_11 = arith.constant 0 : index
    %c0_12 = arith.constant 0 : index
    %24 = vector.load %arg5[%c0_10, %c0_11, %c0_12] : memref<1x256x128xf32, #tpu.memory_space<vmem>>, vector<1x256x128xf32>
    %25 = vector.shape_cast %24 : vector<1x256x128xf32> to vector<256x128xf32>
    %26 = vector.shape_cast %23 : vector<256x128xf32> to vector<1x256x128xf32>
    tpu.vector_store %arg5[%c0_10, %c0_11, %c0_12], %26 {strides = array<i32>} : memref<1x256x128xf32, #tpu.memory_space<vmem>>, vector<1x256x128xf32>,
    return
  }
  func.func @transform_0(%arg0: i32) -> (i32, i32, i32, i32) {
    %c0_i32 = arith.constant 0 : i32
    %c0_i32_0 = arith.constant 0 : i32
    %c0_i32_1 = arith.constant 0 : i32
    %c0_i32_2 = arith.constant 0 : i32
    return %arg0, %c0_i32, %c0_i32_0, %c0_i32_1 : i32, i32, i32, i32
  }
  func.func @transform_1(%arg0: i32) -> (i32, i32) {
    %c0_i32 = arith.constant 0 : i32
    %c0_i32_0 = arith.constant 0 : i32
    %c0_i32_1 = arith.constant 0 : i32
    return %c0_i32, %c0_i32_0 : i32, i32
  }
  func.func @transform_2(%arg0: i32) -> (i32, i32) {
    %c0_i32 = arith.constant 0 : i32
    %c0_i32_0 = arith.constant 0 : i32
    %c0_i32_1 = arith.constant 0 : i32
    return %c0_i32, %c0_i32_0 : i32, i32
  }
  func.func @transform_3(%arg0: i32) -> (i32, i32) {
    %c0_i32 = arith.constant 0 : i32
    %c0_i32_0 = arith.constant 0 : i32
    %c0_i32_1 = arith.constant 0 : i32
    return %c0_i32, %c0_i32_0 : i32, i32
  }
  func.func @transform_4(%arg0: i32) -> (i32, i32, i32) {
    %c0_i32 = arith.constant 0 : i32
    %c0_i32_0 = arith.constant 0 : i32
    %c0_i32_1 = arith.constant 0 : i32
    return %arg0, %c0_i32, %c0_i32_0 : i32, i32, i32
  }
}

</mosaic_0001>

<llo_original>
// kernel: conv_block_forward.1
$region0: #{conv_block_forward.1}
  #allocation0 [shape = 'u32[]', space=smem, size = 0x4, offset = 0x4, fixed_abs, tag = 'smem constant byte address 0x4 - core index']
  #allocation1 [shape = 'u32[144,128]{1,0:T(1,128)}', space=vmem, size = 0x12000, scoped, tag = 'internal scratch']
  %s0 = inlined_call_operand.vmem [shape: f32[2,18,18,4], index: 0, kind: input, shape index: {}]
  %s1 = inlined_call_operand.vmem [shape: bf16[36,128], index: 1, kind: input, shape index: {}]
  %s2 = inlined_call_operand.vmem [shape: f32[1,128], index: 2, kind: input, shape index: {}]
  %s3 = inlined_call_operand.vmem [shape: f32[1,128], index: 3, kind: input, shape index: {}]
  %s4 = inlined_call_operand.vmem [shape: f32[2,256,128], index: 4, kind: output, shape index: {}]
  %s5 = sld [smem:[#allocation0]]
  $region49: #{conv_block_forward.1} parent=0
    _
  %s7 = ssub.s32 1, %s5
  %s8 = scalar_select 0, %s7, %s5
  loop: start=0, step=1, limit=4
  $region2: #{conv_block_forward.1} parent=0 // loop_pre_header
    _
  $region3: #{conv_block_forward.1} parent=0 // loop_header
    %s10 = sphi 0, %s14
    %p11 = scmp.ge.s32.totalorder %s10, 4
    %s20 = sphi 0, %s22
    %s23 = sphi 0, %s20
    %s24 = sphi 0, %s23
    %s40 = sphi 0, %s24
    %s44 = sphi 0, %s44
    %s46 = sphi 0, %s44
    %s47 = sphi 0, %s46
    %s61 = sphi 0, %s47
    %s65 = sphi 0, %s65
    %s67 = sphi 0, %s65
    %s68 = sphi 0, %s67
    %s82 = sphi 0, %s68
    %s86 = sphi 0, %s86
    %s88 = sphi 0, %s86
    %s89 = sphi 0, %s88
    %s103 = sphi 0, %s89
    %s109 = sphi 0, %s111
    %s112 = sphi 0, %s109
    %s113 = sphi 0, %s112
    %s129 = sphi 0, %s113
  $region4: #{conv_block_forward.1} parent=0 // loop_header_branch
    %13 = sbr.rel (%p11) target = $region8
  $region5: #{conv_block_forward.1} parent=0 // loop_body
    %s15 = ssub.s32 %s10, 1
    %s16 = ssub.s32 %s10, 2
    %s17 = sadd.s32 %s10, 1
    %s18 = ssub.s32 %s10, %s17
    %p19 = scmp.eq.s32.totalorder %s18, 0
    %s21 = sadd.s32 %s20, 1
    %s22 = scalar_select %p19, %s20, %s21
    %p25 = pneg %p19
    %p26 = scmp.eq.s32.totalorder %s10, 1
    %p27 = por %p25, %p26
    %p28 = scmp.ne.s32.totalorder %s20, %s23
    %p29 = scmp.eq.s32.totalorder %s10, 0
    %p30 = por %p28, %p29
    %p31 = scmp.ne.s32.totalorder %s20, %s23
    %p32 = scmp.eq.s32.totalorder %s15, 1
    %p33 = por %p31, %p32
    %p34 = scmp.ne.s32.totalorder %s23, %s24
    %p35 = scmp.eq.s32.totalorder %s15, 0
    %p36 = por %p34, %p35
    %p37 = scmp.ne.s32.totalorder %s23, %s24
    %p38 = scmp.eq.s32.totalorder %s16, 1
    %p39 = por %p37, %p38
    %p41 = scmp.ne.s32.totalorder %s24, %s40
    %p42 = scmp.eq.s32.totalorder %s16, 0
    %p43 = por %p41, %p42
    %s45 = sadd.s32 %s44, 1
    %p48 = scmp.eq.s32.totalorder %s10, 1
    %p49 = scmp.ne.s32.totalorder %s44, %s46
    %p50 = scmp.eq.s32.totalorder %s10, 0
    %p51 = por %p49, %p50
    %p52 = scmp.ne.s32.totalorder %s44, %s46
    %p53 = scmp.eq.s32.totalorder %s15, 1
    %p54 = por %p52, %p53
    %p55 = scmp.ne.s32.totalorder %s46, %s47
    %p56 = scmp.eq.s32.totalorder %s15, 0
    %p57 = por %p55, %p56
    %p58 = scmp.ne.s32.totalorder %s46, %s47
    %p59 = scmp.eq.s32.totalorder %s16, 1
    %p60 = por %p58, %p59
    %p62 = scmp.ne.s32.totalorder %s47, %s61
    %p63 = scmp.eq.s32.totalorder %s16, 0
    %p64 = por %p62, %p63
    %s66 = sadd.s32 %s65, 1
    %p69 = scmp.eq.s32.totalorder %s10, 1
    %p70 = scmp.ne.s32.totalorder %s65, %s67
    %p71 = scmp.eq.s32.totalorder %s10, 0
    %p72 = por %p70, %p71
    %p73 = scmp.ne.s32.totalorder %s65, %s67
    %p74 = scmp.eq.s32.totalorder %s15, 1
    %p75 = por %p73, %p74
    %p76 = scmp.ne.s32.totalorder %s67, %s68
    %p77 = scmp.eq.s32.totalorder %s15, 0
    %p78 = por %p76, %p77
    %p79 = scmp.ne.s32.totalorder %s67, %s68
    %p80 = scmp.eq.s32.totalorder %s16, 1
    %p81 = por %p79, %p80
    %p83 = scmp.ne.s32.totalorder %s68, %s82
    %p84 = scmp.eq.s32.totalorder %s16, 0
    %p85 = por %p83, %p84
    %s87 = sadd.s32 %s86, 1
    %p90 = scmp.eq.s32.totalorder %s10, 1
    %p91 = scmp.ne.s32.totalorder %s86, %s88
    %p92 = scmp.eq.s32.totalorder %s10, 0
    %p93 = por %p91, %p92
    %p94 = scmp.ne.s32.totalorder %s86, %s88
    %p95 = scmp.eq.s32.totalorder %s15, 1
    %p96 = por %p94, %p95
    %p97 = scmp.ne.s32.totalorder %s88, %s89
    %p98 = scmp.eq.s32.totalorder %s15, 0
    %p99 = por %p97, %p98
    %p100 = scmp.ne.s32.totalorder %s88, %s89
    %p101 = scmp.eq.s32.totalorder %s16, 1
    %p102 = por %p100, %p101
    %p104 = scmp.ne.s32.totalorder %s89, %s103
    %p105 = scmp.eq.s32.totalorder %s16, 0
    %p106 = por %p104, %p105
    %s107 = ssub.s32 %s10, %s17
    %p108 = scmp.eq.s32.totalorder %s107, 0
    %s110 = sadd.s32 %s109, 1
    %s111 = scalar_select %p108, %s109, %s110
    %p114 = pneg %p108
    %p115 = scmp.eq.s32.totalorder %s10, 1
    %p116 = por %p114, %p115
    %p117 = scmp.ne.s32.totalorder %s109, %s112
    %p118 = scmp.eq.s32.totalorder %s10, 0
    %p119 = por %p117, %p118
    %p120 = scmp.ne.s32.totalorder %s109, %s112
    %p121 = scmp.eq.s32.totalorder %s15, 1
    %p122 = por %p120, %p121
    %p123 = scmp.ne.s32.totalorder %s112, %s113
    %p124 = scmp.eq.s32.totalorder %s15, 0
    %p125 = por %p123, %p124
    %p126 = scmp.ne.s32.totalorder %s112, %s113
    %p127 = scmp.eq.s32.totalorder %s16, 1
    %p128 = por %p126, %p127
    %p130 = scmp.ne.s32.totalorder %s113, %s129
    %p131 = scmp.eq.s32.totalorder %s16, 0
    %p132 = por %p130, %p131
    %p133 = scmp.le.s32.totalorder 1, %s10
    %p134 = scmp.lt.s32.totalorder %s10, 3
    %p135 = pnand %p133, %p134
    %p136 = pneg %p135
    // Predicated region
    $region9: #{conv_block_forward.1} parent=5 // pred_check
      _
    $region10: #{conv_block_forward.1} parent=5 // pred_check_branch
      %138 = sbr.rel (%p135) target = $region12
    $region11: #{conv_block_forward.1} parent=5 // pred_region
      %s139 = ssub.s32 %s10, 1
      // Predicated region
      $region13: #{conv_block_forward.1} parent=11 // pred_check
        %p140 = pneg %p57
      $region14: #{conv_block_forward.1} parent=11 // pred_check_branch
        %142 = sbr.rel (%p140) target = $region16
      $region15: #{conv_block_forward.1} parent=11 // pred_region
        _
      $region16: #{conv_block_forward.1} parent=11 // pred_fallthru
        _
      // Predicated region
      $region17: #{conv_block_forward.1} parent=11 // pred_check
        %p143 = pneg %p78
      $region18: #{conv_block_forward.1} parent=11 // pred_check_branch
        %145 = sbr.rel (%p143) target = $region20
      $region19: #{conv_block_forward.1} parent=11 // pred_region
        _
      $region20: #{conv_block_forward.1} parent=11 // pred_fallthru
        _
      // Predicated region
      $region21: #{conv_block_forward.1} parent=11 // pred_check
        %p146 = pneg %p99
      $region22: #{conv_block_forward.1} parent=11 // pred_check_branch
        %148 = sbr.rel (%p146) target = $region24
      $region23: #{conv_block_forward.1} parent=11 // pred_region
        _
      $region24: #{conv_block_forward.1} parent=11 // pred_fallthru
        _
    $region12: #{conv_block_forward.1} parent=5 // pred_fallthru
      _
    %p149 = scmp.lt.s32.totalorder %s10, 2
    // Predicated region
    $region25: #{conv_block_forward.1} parent=5 // pred_check
      %p150 = pneg %p149
    $region26: #{conv_block_forward.1} parent=5 // pred_check_branch
      %152 = sbr.rel (%p150) target = $region28
    $region27: #{conv_block_forward.1} parent=5 // pred_region
      // Predicated region
      $region29: #{conv_block_forward.1} parent=27 // pred_check
        %p153 = pneg %p30
      $region30: #{conv_block_forward.1} parent=27 // pred_check_branch
        %155 = sbr.rel (%p153) target = $region32
      $region31: #{conv_block_forward.1} parent=27 // pred_region
        %p156 = scmp.lt.s32.totalorder %s10, 1
        %s157 = scalar_select %p156, %s10, 1
        %s158 = smul.addr %s157, 54
        %s159 = smul.addr %s158, 8
        %s160 = scalar_lea.vmem %s0, %s159
      $region32: #{conv_block_forward.1} parent=27 // pred_fallthru
        _
    $region28: #{conv_block_forward.1} parent=5 // pred_fallthru
      _
    %p161 = scmp.le.s32.totalorder 1, %s10
    %p162 = scmp.lt.s32.totalorder %s10, 3
    %p163 = pnand %p161, %p162
    %p164 = pneg %p163
    // Predicated region
    $region33: #{conv_block_forward.1} parent=5 // pred_check
      _
    $region34: #{conv_block_forward.1} parent=5 // pred_check_branch
      %166 = sbr.rel (%p163) target = $region36
    $region35: #{conv_block_forward.1} parent=5 // pred_region
      %s167 = ssub.s32 %s10, 1
      %p168 = scmp.lt.s32.totalorder %s15, 1
      %s169 = scalar_select %p168, %s15, 1
      %s170 = smul.addr %s169, 54
      %s171 = smul.addr %s170, 8
      %s172 = scalar_lea.vmem %s0, %s171
      %p173 = pneg %p36
      %p174 = pneg %p33
      %p175 = pneg %p57
      %p176 = pneg %p54
      %p177 = pneg %p78
      %p178 = pneg %p75
      %p179 = pneg %p99
      %p180 = pneg %p96
      %p181 = pneg %p125
      %p182 = pneg %p122
      %p183 = scmp.lt.s32.totalorder %s15, 1
      %s184 = scalar_select %p183, %s15, 1
      %s185 = smul.addr %s184, 32
      %s186 = smul.addr %s185, 8
      %s187 = scalar_lea.vmem %s4, %s186
      %p188 = scmp.lt.s32.totalorder %s15, 1
      %s189 = scalar_select %p188, %s15, 1
      %s190 = smul.addr %s189, 54
      %s191 = smul.addr %s190, 8
      %s192 = scalar_lea.vmem %s0, %s191
      %p193 = scmp.lt.s32.totalorder %s15, 1
      %s194 = scalar_select %p193, %s15, 1
      %s195 = smul.addr %s194, 32
      %s196 = smul.addr %s195, 8
      %s197 = scalar_lea.vmem %s4, %s196
      %v199 = vld [vmem:[%s192] sm:$0xff]
      %v200 = vld [vmem:[%s192 + $0x8] sm:$0xff]
      %v201 = vld [vmem:[%s192 + $0x10] sm:$0x3]
      %v202 = vld [vmem:[%s192 + $0x18] sm:$0xff]
      %v203 = vld [vmem:[%s192 + $0x20] sm:$0xff]
      %v204 = vld [vmem:[%s192 + $0x28] sm:$0x3]
      %v205 = vld [vmem:[%s192 + $0x30] sm:$0xff]
      %v206 = vld [vmem:[%s192 + $0x38] sm:$0xff]
      %v207 = vld [vmem:[%s192 + $0x40] sm:$0x3]
      %v208 = vld [vmem:[%s192 + $0x48] sm:$0xff]
      %v209 = vld [vmem:[%s192 + $0x50] sm:$0xff]
      %v210 = vld [vmem:[%s192 + $0x58] sm:$0x3]
      %v211 = vld [vmem:[%s192 + $0x60] sm:$0xff]
      %v212 = vld [vmem:[%s192 + $0x68] sm:$0xff]
      %v213 = vld [vmem:[%s192 + $0x70] sm:$0x3]
      %v214 = vld [vmem:[%s192 + $0x78] sm:$0xff]
      %v215 = vld [vmem:[%s192 + $0x80] sm:$0xff]
      %v216 = vld [vmem:[%s192 + $0x88] sm:$0x3]
      %v217 = vld [vmem:[%s192 + $0x90] sm:$0xff]
      %v218 = vld [vmem:[%s192 + $0x98] sm:$0xff]
      %v219 = vld [vmem:[%s192 + $0xa0] sm:$0x3]
      %v220 = vld [vmem:[%s192 + $0xa8] sm:$0xff]
      %v221 = vld [vmem:[%s192 + $0xb0] sm:$0xff]
      %v222 = vld [vmem:[%s192 + $0xb8] sm:$0x3]
      %v223 = vld [vmem:[%s192 + $0xc0] sm:$0xff]
      %v224 = vld [vmem:[%s192 + $0xc8] sm:$0xff]
      %v225 = vld [vmem:[%s192 + $0xd0] sm:$0x3]
      %v226 = vld [vmem:[%s192 + $0xd8] sm:$0xff]
      %v227 = vld [vmem:[%s192 + $0xe0] sm:$0xff]
      %v228 = vld [vmem:[%s192 + $0xe8] sm:$0x3]
      %v229 = vld [vmem:[%s192 + $0xf0] sm:$0xff]
      %v230 = vld [vmem:[%s192 + $0xf8] sm:$0xff]
      %v231 = vld [vmem:[%s192 + $0x100] sm:$0x3]
      %v232 = vld [vmem:[%s192 + $0x108] sm:$0xff]
      %v233 = vld [vmem:[%s192 + $0x110] sm:$0xff]
      %v234 = vld [vmem:[%s192 + $0x118] sm:$0x3]
      %v235 = vld [vmem:[%s192 + $0x120] sm:$0xff]
      %v236 = vld [vmem:[%s192 + $0x128] sm:$0xff]
      %v237 = vld [vmem:[%s192 + $0x130] sm:$0x3]
      %v238 = vld [vmem:[%s192 + $0x138] sm:$0xff]
      %v239 = vld [vmem:[%s192 + $0x140] sm:$0xff]
      %v240 = vld [vmem:[%s192 + $0x148] sm:$0x3]
      %v241 = vld [vmem:[%s192 + $0x150] sm:$0xff]
      %v242 = vld [vmem:[%s192 + $0x158] sm:$0xff]
      %v243 = vld [vmem:[%s192 + $0x160] sm:$0x3]
      %v244 = vld [vmem:[%s192 + $0x168] sm:$0xff]
      %v245 = vld [vmem:[%s192 + $0x170] sm:$0xff]
      %v246 = vld [vmem:[%s192 + $0x178] sm:$0x3]
      %v247 = vld [vmem:[%s192 + $0x180] sm:$0xff]
      %v248 = vld [vmem:[%s192 + $0x188] sm:$0xff]
      %v249 = vld [vmem:[%s192 + $0x190] sm:$0x3]
      %v250 = vld [vmem:[%s192 + $0x198] sm:$0xff]
      %v251 = vld [vmem:[%s192 + $0x1a0] sm:$0xff]
      %v252 = vld [vmem:[%s192 + $0x1a8] sm:$0x3]
      %vm301 = vcmask 1046528
      %v302 = vrot.slane %v199, 1
      %v303 = vrot.slane %v200, 1
      %v304 = vsel %vm301, %v302, %v303
      %v305 = vrot.slane %v201, 1
      %v306 = vsel %vm301, %v303, %v305
      %v307 = vrot.slane %v202, 1
      %v308 = vrot.slane %v203, 1
      %v309 = vsel %vm301, %v307, %v308
      %v310 = vrot.slane %v204, 1
      %v311 = vsel %vm301, %v308, %v310
      %v312 = vrot.slane %v205, 1
      %v313 = vrot.slane %v206, 1
      %v314 = vsel %vm301, %v312, %v313
      %v315 = vrot.slane %v207, 1
      %v316 = vsel %vm301, %v313, %v315
      %v317 = vrot.slane %v208, 1
      %v318 = vrot.slane %v209, 1
      %v319 = vsel %vm301, %v317, %v318
      %v320 = vrot.slane %v210, 1
      %v321 = vsel %vm301, %v318, %v320
      %v322 = vrot.slane %v211, 1
      %v323 = vrot.slane %v212, 1
      %v324 = vsel %vm301, %v322, %v323
      %v325 = vrot.slane %v213, 1
      %v326 = vsel %vm301, %v323, %v325
      %v327 = vrot.slane %v214, 1
      %v328 = vrot.slane %v215, 1
      %v329 = vsel %vm301, %v327, %v328
      %v330 = vrot.slane %v216, 1
      %v331 = vsel %vm301, %v328, %v330
      %v332 = vrot.slane %v217, 1
      %v333 = vrot.slane %v218, 1
      %v334 = vsel %vm301, %v332, %v333
      %v335 = vrot.slane %v219, 1
      %v336 = vsel %vm301, %v333, %v335
      %v337 = vrot.slane %v220, 1
      %v338 = vrot.slane %v221, 1
      %v339 = vsel %vm301, %v337, %v338
      %v340 = vrot.slane %v222, 1
      %v341 = vsel %vm301, %v338, %v340
      %v342 = vrot.slane %v223, 1
      %v343 = vrot.slane %v224, 1
      %v344 = vsel %vm301, %v342, %v343
      %v345 = vrot.slane %v225, 1
      %v346 = vsel %vm301, %v343, %v345
      %v347 = vrot.slane %v226, 1
      %v348 = vrot.slane %v227, 1
      %v349 = vsel %vm301, %v347, %v348
      %v350 = vrot.slane %v228, 1
      %v351 = vsel %vm301, %v348, %v350
      %v352 = vrot.slane %v229, 1
      %v353 = vrot.slane %v230, 1
      %v354 = vsel %vm301, %v352, %v353
      %v355 = vrot.slane %v231, 1
      %v356 = vsel %vm301, %v353, %v355
      %v357 = vrot.slane %v232, 1
      %v358 = vrot.slane %v233, 1
      %v359 = vsel %vm301, %v357, %v358
      %v360 = vrot.slane %v234, 1
      %v361 = vsel %vm301, %v358, %v360
      %v362 = vrot.slane %v235, 1
      %v363 = vrot.slane %v236, 1
      %v364 = vsel %vm301, %v362, %v363
      %v365 = vrot.slane %v237, 1
      %v366 = vsel %vm301, %v363, %v365
      %v367 = vrot.slane %v238, 1
      %v368 = vrot.slane %v239, 1
      %v369 = vsel %vm301, %v367, %v368
      %v370 = vrot.slane %v240, 1
      %v371 = vsel %vm301, %v368, %v370
      %v372 = vrot.slane %v241, 1
      %v373 = vrot.slane %v242, 1
      %v374 = vsel %vm301, %v372, %v373
      %v375 = vrot.slane %v243, 1
      %v376 = vsel %vm301, %v373, %v375
      %v377 = vrot.slane %v244, 1
      %v378 = vrot.slane %v245, 1
      %v379 = vsel %vm301, %v377, %v378
      %v380 = vrot.slane %v246, 1
      %v381 = vsel %vm301, %v378, %v380
      %382 = vrot.lane.b32.xlu0 %v304, 4
      %v383 = vpop.permute.xlu0 %382
      %384 = vrot.lane.b32.xlu0 %v306, 4
      %v385 = vpop.permute.xlu0 %384
      %386 = vrot.lane.b32.xlu0 %v309, 4
      %v387 = vpop.permute.xlu0 %386
      %388 = vrot.lane.b32.xlu0 %v311, 4
      %v389 = vpop.permute.xlu0 %388
      %390 = vrot.lane.b32.xlu0 %v314, 4
      %v391 = vpop.permute.xlu0 %390
      %392 = vrot.lane.b32.xlu0 %v316, 4
      %v393 = vpop.permute.xlu0 %392
      %394 = vrot.lane.b32.xlu0 %v319, 4
      %v395 = vpop.permute.xlu0 %394
      %396 = vrot.lane.b32.xlu0 %v321, 4
      %v397 = vpop.permute.xlu0 %396
      %398 = vrot.lane.b32.xlu0 %v324, 4
      %v399 = vpop.permute.xlu0 %398
      %400 = vrot.lane.b32.xlu0 %v326, 4
      %v401 = vpop.permute.xlu0 %400
      %402 = vrot.lane.b32.xlu0 %v329, 4
      %v403 = vpop.permute.xlu0 %402
      %404 = vrot.lane.b32.xlu0 %v331, 4
      %v405 = vpop.permute.xlu0 %404
      %406 = vrot.lane.b32.xlu0 %v334, 4
      %v407 = vpop.permute.xlu0 %406
      %408 = vrot.lane.b32.xlu0 %v336, 4
      %v409 = vpop.permute.xlu0 %408
      %410 = vrot.lane.b32.xlu0 %v339, 4
      %v411 = vpop.permute.xlu0 %410
      %412 = vrot.lane.b32.xlu0 %v341, 4
      %v413 = vpop.permute.xlu0 %412
      %414 = vrot.lane.b32.xlu0 %v344, 4
      %v415 = vpop.permute.xlu0 %414
      %416 = vrot.lane.b32.xlu0 %v346, 4
      %v417 = vpop.permute.xlu0 %416
      %418 = vrot.lane.b32.xlu0 %v349, 4
      %v419 = vpop.permute.xlu0 %418
      %420 = vrot.lane.b32.xlu0 %v351, 4
      %v421 = vpop.permute.xlu0 %420
      %422 = vrot.lane.b32.xlu0 %v354, 4
      %v423 = vpop.permute.xlu0 %422
      %424 = vrot.lane.b32.xlu0 %v356, 4
      %v425 = vpop.permute.xlu0 %424
      %426 = vrot.lane.b32.xlu0 %v359, 4
      %v427 = vpop.permute.xlu0 %426
      %428 = vrot.lane.b32.xlu0 %v361, 4
      %v429 = vpop.permute.xlu0 %428
      %430 = vrot.lane.b32.xlu0 %v364, 4
      %v431 = vpop.permute.xlu0 %430
      %432 = vrot.lane.b32.xlu0 %v366, 4
      %v433 = vpop.permute.xlu0 %432
      %434 = vrot.lane.b32.xlu0 %v369, 4
      %v435 = vpop.permute.xlu0 %434
      %436 = vrot.lane.b32.xlu0 %v371, 4
      %v437 = vpop.permute.xlu0 %436
      %438 = vrot.lane.b32.xlu0 %v374, 4
      %v439 = vpop.permute.xlu0 %438
      %440 = vrot.lane.b32.xlu0 %v376, 4
      %v441 = vpop.permute.xlu0 %440
      %442 = vrot.lane.b32.xlu0 %v379, 4
      %v443 = vpop.permute.xlu0 %442
      %444 = vrot.lane.b32.xlu0 %v381, 4
      %v445 = vpop.permute.xlu0 %444
      %vm478 = vcmask 1045504
      %v479 = vrot.slane %v199, 2
      %v480 = vrot.slane %v200, 2
      %v481 = vsel %vm478, %v479, %v480
      %v482 = vrot.slane %v201, 2
      %v483 = vsel %vm478, %v480, %v482
      %v484 = vrot.slane %v202, 2
      %v485 = vrot.slane %v203, 2
      %v486 = vsel %vm478, %v484, %v485
      %v487 = vrot.slane %v204, 2
      %v488 = vsel %vm478, %v485, %v487
      %v489 = vrot.slane %v205, 2
      %v490 = vrot.slane %v206, 2
      %v491 = vsel %vm478, %v489, %v490
      %v492 = vrot.slane %v207, 2
      %v493 = vsel %vm478, %v490, %v492
      %v494 = vrot.slane %v208, 2
      %v495 = vrot.slane %v209, 2
      %v496 = vsel %vm478, %v494, %v495
      %v497 = vrot.slane %v210, 2
      %v498 = vsel %vm478, %v495, %v497
      %v499 = vrot.slane %v211, 2
      %v500 = vrot.slane %v212, 2
      %v501 = vsel %vm478, %v499, %v500
      %v502 = vrot.slane %v213, 2
      %v503 = vsel %vm478, %v500, %v502
      %v504 = vrot.slane %v214, 2
      %v505 = vrot.slane %v215, 2
      %v506 = vsel %vm478, %v504, %v505
      %v507 = vrot.slane %v216, 2
      %v508 = vsel %vm478, %v505, %v507
      %v509 = vrot.slane %v217, 2
      %v510 = vrot.slane %v218, 2
      %v511 = vsel %vm478, %v509, %v510
      %v512 = vrot.slane %v219, 2
      %v513 = vsel %vm478, %v510, %v512
      %v514 = vrot.slane %v220, 2
      %v515 = vrot.slane %v221, 2
      %v516 = vsel %vm478, %v514, %v515
      %v517 = vrot.slane %v222, 2
      %v518 = vsel %vm478, %v515, %v517
      %v519 = vrot.slane %v223, 2
      %v520 = vrot.slane %v224, 2
      %v521 = vsel %vm478, %v519, %v520
      %v522 = vrot.slane %v225, 2
      %v523 = vsel %vm478, %v520, %v522
      %v524 = vrot.slane %v226, 2
      %v525 = vrot.slane %v227, 2
      %v526 = vsel %vm478, %v524, %v525
      %v527 = vrot.slane %v228, 2
      %v528 = vsel %vm478, %v525, %v527
      %v529 = vrot.slane %v229, 2
      %v530 = vrot.slane %v230, 2
      %v531 = vsel %vm478, %v529, %v530
      %v532 = vrot.slane %v231, 2
      %v533 = vsel %vm478, %v530, %v532
      %v534 = vrot.slane %v232, 2
      %v535 = vrot.slane %v233, 2
      %v536 = vsel %vm478, %v534, %v535
      %v537 = vrot.slane %v234, 2
      %v538 = vsel %vm478, %v535, %v537
      %v539 = vrot.slane %v235, 2
      %v540 = vrot.slane %v236, 2
      %v541 = vsel %vm478, %v539, %v540
      %v542 = vrot.slane %v237, 2
      %v543 = vsel %vm478, %v540, %v542
      %v544 = vrot.slane %v238, 2
      %v545 = vrot.slane %v239, 2
      %v546 = vsel %vm478, %v544, %v545
      %v547 = vrot.slane %v240, 2
      %v548 = vsel %vm478, %v545, %v547
      %v549 = vrot.slane %v241, 2
      %v550 = vrot.slane %v242, 2
      %v551 = vsel %vm478, %v549, %v550
      %v552 = vrot.slane %v243, 2
      %v553 = vsel %vm478, %v550, %v552
      %v554 = vrot.slane %v244, 2
      %v555 = vrot.slane %v245, 2
      %v556 = vsel %vm478, %v554, %v555
      %v557 = vrot.slane %v246, 2
      %v558 = vsel %vm478, %v555, %v557
      %559 = vrot.lane.b32.xlu0 %v481, 8
      %v560 = vpop.permute.xlu0 %559
      %561 = vrot.lane.b32.xlu0 %v483, 8
      %v562 = vpop.permute.xlu0 %561
      %563 = vrot.lane.b32.xlu0 %v486, 8
      %v564 = vpop.permute.xlu0 %563
      %565 = vrot.lane.b32.xlu0 %v488, 8
      %v566 = vpop.permute.xlu0 %565
      %567 = vrot.lane.b32.xlu0 %v491, 8
      %v568 = vpop.permute.xlu0 %567
      %569 = vrot.lane.b32.xlu0 %v493, 8
      %v570 = vpop.permute.xlu0 %569
      %571 = vrot.lane.b32.xlu0 %v496, 8
      %v572 = vpop.permute.xlu0 %571
      %573 = vrot.lane.b32.xlu0 %v498, 8
      %v574 = vpop.permute.xlu0 %573
      %575 = vrot.lane.b32.xlu0 %v501, 8
      %v576 = vpop.permute.xlu0 %575
      %577 = vrot.lane.b32.xlu0 %v503, 8
      %v578 = vpop.permute.xlu0 %577
      %579 = vrot.lane.b32.xlu0 %v506, 8
      %v580 = vpop.permute.xlu0 %579
      %581 = vrot.lane.b32.xlu0 %v508, 8
      %v582 = vpop.permute.xlu0 %581
      %583 = vrot.lane.b32.xlu0 %v511, 8
      %v584 = vpop.permute.xlu0 %583
      %585 = vrot.lane.b32.xlu0 %v513, 8
      %v586 = vpop.permute.xlu0 %585
      %587 = vrot.lane.b32.xlu0 %v516, 8
      %v588 = vpop.permute.xlu0 %587
      %589 = vrot.lane.b32.xlu0 %v518, 8
      %v590 = vpop.permute.xlu0 %589
      %591 = vrot.lane.b32.xlu0 %v521, 8
      %v592 = vpop.permute.xlu0 %591
      %593 = vrot.lane.b32.xlu0 %v523, 8
      %v594 = vpop.permute.xlu0 %593
      %595 = vrot.lane.b32.xlu0 %v526, 8
      %v596 = vpop.permute.xlu0 %595
      %597 = vrot.lane.b32.xlu0 %v528, 8
      %v598 = vpop.permute.xlu0 %597
      %599 = vrot.lane.b32.xlu0 %v531, 8
      %v600 = vpop.permute.xlu0 %599
      %601 = vrot.lane.b32.xlu0 %v533, 8
      %v602 = vpop.permute.xlu0 %601
      %603 = vrot.lane.b32.xlu0 %v536, 8
      %v604 = vpop.permute.xlu0 %603
      %605 = vrot.lane.b32.xlu0 %v538, 8
      %v606 = vpop.permute.xlu0 %605
      %607 = vrot.lane.b32.xlu0 %v541, 8
      %v608 = vpop.permute.xlu0 %607
      %609 = vrot.lane.b32.xlu0 %v543, 8
      %v610 = vpop.permute.xlu0 %609
      %611 = vrot.lane.b32.xlu0 %v546, 8
      %v612 = vpop.permute.xlu0 %611
      %613 = vrot.lane.b32.xlu0 %v548, 8
      %v614 = vpop.permute.xlu0 %613
      %615 = vrot.lane.b32.xlu0 %v551, 8
      %v616 = vpop.permute.xlu0 %615
      %617 = vrot.lane.b32.xlu0 %v553, 8
      %v618 = vpop.permute.xlu0 %617
      %619 = vrot.lane.b32.xlu0 %v556, 8
      %v620 = vpop.permute.xlu0 %619
      %621 = vrot.lane.b32.xlu0 %v558, 8
      %v622 = vpop.permute.xlu0 %621
      %657 = vrot.lane.b32.xlu0 %v202, 12
      %v658 = vpop.permute.xlu0 %657
      %659 = vrot.lane.b32.xlu0 %v203, 12
      %v660 = vpop.permute.xlu0 %659
      %661 = vrot.lane.b32.xlu0 %v205, 12
      %v662 = vpop.permute.xlu0 %661
      %663 = vrot.lane.b32.xlu0 %v206, 12
      %v664 = vpop.permute.xlu0 %663
      %665 = vrot.lane.b32.xlu0 %v208, 12
      %v666 = vpop.permute.xlu0 %665
      %667 = vrot.lane.b32.xlu0 %v209, 12
      %v668 = vpop.permute.xlu0 %667
      %669 = vrot.lane.b32.xlu0 %v211, 12
      %v670 = vpop.permute.xlu0 %669
      %671 = vrot.lane.b32.xlu0 %v212, 12
      %v672 = vpop.permute.xlu0 %671
      %673 = vrot.lane.b32.xlu0 %v214, 12
      %v674 = vpop.permute.xlu0 %673
      %675 = vrot.lane.b32.xlu0 %v215, 12
      %v676 = vpop.permute.xlu0 %675
      %677 = vrot.lane.b32.xlu0 %v217, 12
      %v678 = vpop.permute.xlu0 %677
      %679 = vrot.lane.b32.xlu0 %v218, 12
      %v680 = vpop.permute.xlu0 %679
      %681 = vrot.lane.b32.xlu0 %v220, 12
      %v682 = vpop.permute.xlu0 %681
      %683 = vrot.lane.b32.xlu0 %v221, 12
      %v684 = vpop.permute.xlu0 %683
      %685 = vrot.lane.b32.xlu0 %v223, 12
      %v686 = vpop.permute.xlu0 %685
      %687 = vrot.lane.b32.xlu0 %v224, 12
      %v688 = vpop.permute.xlu0 %687
      %689 = vrot.lane.b32.xlu0 %v226, 12
      %v690 = vpop.permute.xlu0 %689
      %691 = vrot.lane.b32.xlu0 %v227, 12
      %v692 = vpop.permute.xlu0 %691
      %693 = vrot.lane.b32.xlu0 %v229, 12
      %v694 = vpop.permute.xlu0 %693
      %695 = vrot.lane.b32.xlu0 %v230, 12
      %v696 = vpop.permute.xlu0 %695
      %697 = vrot.lane.b32.xlu0 %v232, 12
      %v698 = vpop.permute.xlu0 %697
      %699 = vrot.lane.b32.xlu0 %v233, 12
      %v700 = vpop.permute.xlu0 %699
      %701 = vrot.lane.b32.xlu0 %v235, 12
      %v702 = vpop.permute.xlu0 %701
      %703 = vrot.lane.b32.xlu0 %v236, 12
      %v704 = vpop.permute.xlu0 %703
      %705 = vrot.lane.b32.xlu0 %v238, 12
      %v706 = vpop.permute.xlu0 %705
      %707 = vrot.lane.b32.xlu0 %v239, 12
      %v708 = vpop.permute.xlu0 %707
      %709 = vrot.lane.b32.xlu0 %v241, 12
      %v710 = vpop.permute.xlu0 %709
      %711 = vrot.lane.b32.xlu0 %v242, 12
      %v712 = vpop.permute.xlu0 %711
      %713 = vrot.lane.b32.xlu0 %v244, 12
      %v714 = vpop.permute.xlu0 %713
      %715 = vrot.lane.b32.xlu0 %v245, 12
      %v716 = vpop.permute.xlu0 %715
      %717 = vrot.lane.b32.xlu0 %v247, 12
      %v718 = vpop.permute.xlu0 %717
      %719 = vrot.lane.b32.xlu0 %v248, 12
      %v720 = vpop.permute.xlu0 %719
      %v754 = vrot.slane %v247, 1
      %v755 = vrot.slane %v248, 1
      %v756 = vsel %vm301, %v754, %v755
      %v757 = vrot.slane %v249, 1
      %v758 = vsel %vm301, %v755, %v757
      %759 = vrot.lane.b32.xlu0 %v309, 16
      %v760 = vpop.permute.xlu0 %759
      %761 = vrot.lane.b32.xlu0 %v311, 16
      %v762 = vpop.permute.xlu0 %761
      %763 = vrot.lane.b32.xlu0 %v314, 16
      %v764 = vpop.permute.xlu0 %763
      %765 = vrot.lane.b32.xlu0 %v316, 16
      %v766 = vpop.permute.xlu0 %765
      %767 = vrot.lane.b32.xlu0 %v319, 16
      %v768 = vpop.permute.xlu0 %767
      %769 = vrot.lane.b32.xlu0 %v321, 16
      %v770 = vpop.permute.xlu0 %769
      %771 = vrot.lane.b32.xlu0 %v324, 16
      %v772 = vpop.permute.xlu0 %771
      %773 = vrot.lane.b32.xlu0 %v326, 16
      %v774 = vpop.permute.xlu0 %773
      %775 = vrot.lane.b32.xlu0 %v329, 16
      %v776 = vpop.permute.xlu0 %775
      %777 = vrot.lane.b32.xlu0 %v331, 16
      %v778 = vpop.permute.xlu0 %777
      %779 = vrot.lane.b32.xlu0 %v334, 16
      %v780 = vpop.permute.xlu0 %779
      %781 = vrot.lane.b32.xlu0 %v336, 16
      %v782 = vpop.permute.xlu0 %781
      %783 = vrot.lane.b32.xlu0 %v339, 16
      %v784 = vpop.permute.xlu0 %783
      %785 = vrot.lane.b32.xlu0 %v341, 16
      %v786 = vpop.permute.xlu0 %785
      %787 = vrot.lane.b32.xlu0 %v344, 16
      %v788 = vpop.permute.xlu0 %787
      %789 = vrot.lane.b32.xlu0 %v346, 16
      %v790 = vpop.permute.xlu0 %789
      %791 = vrot.lane.b32.xlu0 %v349, 16
      %v792 = vpop.permute.xlu0 %791
      %793 = vrot.lane.b32.xlu0 %v351, 16
      %v794 = vpop.permute.xlu0 %793
      %795 = vrot.lane.b32.xlu0 %v354, 16
      %v796 = vpop.permute.xlu0 %795
      %797 = vrot.lane.b32.xlu0 %v356, 16
      %v798 = vpop.permute.xlu0 %797
      %799 = vrot.lane.b32.xlu0 %v359, 16
      %v800 = vpop.permute.xlu0 %799
      %801 = vrot.lane.b32.xlu0 %v361, 16
      %v802 = vpop.permute.xlu0 %801
      %803 = vrot.lane.b32.xlu0 %v364, 16
      %v804 = vpop.permute.xlu0 %803
      %805 = vrot.lane.b32.xlu0 %v366, 16
      %v806 = vpop.permute.xlu0 %805
      %807 = vrot.lane.b32.xlu0 %v369, 16
      %v808 = vpop.permute.xlu0 %807
      %809 = vrot.lane.b32.xlu0 %v371, 16
      %v810 = vpop.permute.xlu0 %809
      %811 = vrot.lane.b32.xlu0 %v374, 16
      %v812 = vpop.permute.xlu0 %811
      %813 = vrot.lane.b32.xlu0 %v376, 16
      %v814 = vpop.permute.xlu0 %813
      %815 = vrot.lane.b32.xlu0 %v379, 16
      %v816 = vpop.permute.xlu0 %815
      %817 = vrot.lane.b32.xlu0 %v381, 16
      %v818 = vpop.permute.xlu0 %817
      %819 = vrot.lane.b32.xlu0 %v756, 16
      %v820 = vpop.permute.xlu0 %819
      %821 = vrot.lane.b32.xlu0 %v758, 16
      %v822 = vpop.permute.xlu0 %821
      %v855 = vrot.slane %v247, 2
      %v856 = vrot.slane %v248, 2
      %v857 = vsel %vm478, %v855, %v856
      %v858 = vrot.slane %v249, 2
      %v859 = vsel %vm478, %v856, %v858
      %860 = vrot.lane.b32.xlu0 %v486, 20
      %v861 = vpop.permute.xlu0 %860
      %862 = vrot.lane.b32.xlu0 %v488, 20
      %v863 = vpop.permute.xlu0 %862
      %864 = vrot.lane.b32.xlu0 %v491, 20
      %v865 = vpop.permute.xlu0 %864
      %866 = vrot.lane.b32.xlu0 %v493, 20
      %v867 = vpop.permute.xlu0 %866
      %868 = vrot.lane.b32.xlu0 %v496, 20
      %v869 = vpop.permute.xlu0 %868
      %870 = vrot.lane.b32.xlu0 %v498, 20
      %v871 = vpop.permute.xlu0 %870
      %872 = vrot.lane.b32.xlu0 %v501, 20
      %v873 = vpop.permute.xlu0 %872
      %874 = vrot.lane.b32.xlu0 %v503, 20
      %v875 = vpop.permute.xlu0 %874
      %876 = vrot.lane.b32.xlu0 %v506, 20
      %v877 = vpop.permute.xlu0 %876
      %878 = vrot.lane.b32.xlu0 %v508, 20
      %v879 = vpop.permute.xlu0 %878
      %880 = vrot.lane.b32.xlu0 %v511, 20
      %v881 = vpop.permute.xlu0 %880
      %882 = vrot.lane.b32.xlu0 %v513, 20
      %v883 = vpop.permute.xlu0 %882
      %884 = vrot.lane.b32.xlu0 %v516, 20
      %v885 = vpop.permute.xlu0 %884
      %886 = vrot.lane.b32.xlu0 %v518, 20
      %v887 = vpop.permute.xlu0 %886
      %888 = vrot.lane.b32.xlu0 %v521, 20
      %v889 = vpop.permute.xlu0 %888
      %890 = vrot.lane.b32.xlu0 %v523, 20
      %v891 = vpop.permute.xlu0 %890
      %892 = vrot.lane.b32.xlu0 %v526, 20
      %v893 = vpop.permute.xlu0 %892
      %894 = vrot.lane.b32.xlu0 %v528, 20
      %v895 = vpop.permute.xlu0 %894
      %896 = vrot.lane.b32.xlu0 %v531, 20
      %v897 = vpop.permute.xlu0 %896
      %898 = vrot.lane.b32.xlu0 %v533, 20
      %v899 = vpop.permute.xlu0 %898
      %900 = vrot.lane.b32.xlu0 %v536, 20
      %v901 = vpop.permute.xlu0 %900
      %902 = vrot.lane.b32.xlu0 %v538, 20
      %v903 = vpop.permute.xlu0 %902
      %904 = vrot.lane.b32.xlu0 %v541, 20
      %v905 = vpop.permute.xlu0 %904
      %906 = vrot.lane.b32.xlu0 %v543, 20
      %v907 = vpop.permute.xlu0 %906
      %908 = vrot.lane.b32.xlu0 %v546, 20
      %v909 = vpop.permute.xlu0 %908
      %910 = vrot.lane.b32.xlu0 %v548, 20
      %v911 = vpop.permute.xlu0 %910
      %912 = vrot.lane.b32.xlu0 %v551, 20
      %v913 = vpop.permute.xlu0 %912
      %914 = vrot.lane.b32.xlu0 %v553, 20
      %v915 = vpop.permute.xlu0 %914
      %916 = vrot.lane.b32.xlu0 %v556, 20
      %v917 = vpop.permute.xlu0 %916
      %918 = vrot.lane.b32.xlu0 %v558, 20
      %v919 = vpop.permute.xlu0 %918
      %920 = vrot.lane.b32.xlu0 %v857, 20
      %v921 = vpop.permute.xlu0 %920
      %922 = vrot.lane.b32.xlu0 %v859, 20
      %v923 = vpop.permute.xlu0 %922
      %958 = vrot.lane.b32.xlu0 %v205, 24
      %v959 = vpop.permute.xlu0 %958
      %960 = vrot.lane.b32.xlu0 %v206, 24
      %v961 = vpop.permute.xlu0 %960
      %962 = vrot.lane.b32.xlu0 %v208, 24
      %v963 = vpop.permute.xlu0 %962
      %964 = vrot.lane.b32.xlu0 %v209, 24
      %v965 = vpop.permute.xlu0 %964
      %966 = vrot.lane.b32.xlu0 %v211, 24
      %v967 = vpop.permute.xlu0 %966
      %968 = vrot.lane.b32.xlu0 %v212, 24
      %v969 = vpop.permute.xlu0 %968
      %970 = vrot.lane.b32.xlu0 %v214, 24
      %v971 = vpop.permute.xlu0 %970
      %972 = vrot.lane.b32.xlu0 %v215, 24
      %v973 = vpop.permute.xlu0 %972
      %974 = vrot.lane.b32.xlu0 %v217, 24
      %v975 = vpop.permute.xlu0 %974
      %976 = vrot.lane.b32.xlu0 %v218, 24
      %v977 = vpop.permute.xlu0 %976
      %978 = vrot.lane.b32.xlu0 %v220, 24
      %v979 = vpop.permute.xlu0 %978
      %980 = vrot.lane.b32.xlu0 %v221, 24
      %v981 = vpop.permute.xlu0 %980
      %982 = vrot.lane.b32.xlu0 %v223, 24
      %v983 = vpop.permute.xlu0 %982
      %984 = vrot.lane.b32.xlu0 %v224, 24
      %v985 = vpop.permute.xlu0 %984
      %986 = vrot.lane.b32.xlu0 %v226, 24
      %v987 = vpop.permute.xlu0 %986
      %988 = vrot.lane.b32.xlu0 %v227, 24
      %v989 = vpop.permute.xlu0 %988
      %990 = vrot.lane.b32.xlu0 %v229, 24
      %v991 = vpop.permute.xlu0 %990
      %992 = vrot.lane.b32.xlu0 %v230, 24
      %v993 = vpop.permute.xlu0 %992
      %994 = vrot.lane.b32.xlu0 %v232, 24
      %v995 = vpop.permute.xlu0 %994
      %996 = vrot.lane.b32.xlu0 %v233, 24
      %v997 = vpop.permute.xlu0 %996
      %998 = vrot.lane.b32.xlu0 %v235, 24
      %v999 = vpop.permute.xlu0 %998
      %1000 = vrot.lane.b32.xlu0 %v236, 24
      %v1001 = vpop.permute.xlu0 %1000
      %1002 = vrot.lane.b32.xlu0 %v238, 24
      %v1003 = vpop.permute.xlu0 %1002
      %1004 = vrot.lane.b32.xlu0 %v239, 24
      %v1005 = vpop.permute.xlu0 %1004
      %1006 = vrot.lane.b32.xlu0 %v241, 24
      %v1007 = vpop.permute.xlu0 %1006
      %1008 = vrot.lane.b32.xlu0 %v242, 24
      %v1009 = vpop.permute.xlu0 %1008
      %1010 = vrot.lane.b32.xlu0 %v244, 24
      %v1011 = vpop.permute.xlu0 %1010
      %1012 = vrot.lane.b32.xlu0 %v245, 24
      %v1013 = vpop.permute.xlu0 %1012
      %1014 = vrot.lane.b32.xlu0 %v247, 24
      %v1015 = vpop.permute.xlu0 %1014
      %1016 = vrot.lane.b32.xlu0 %v248, 24
      %v1017 = vpop.permute.xlu0 %1016
      %1018 = vrot.lane.b32.xlu0 %v250, 24
      %v1019 = vpop.permute.xlu0 %1018
      %1020 = vrot.lane.b32.xlu0 %v251, 24
      %v1021 = vpop.permute.xlu0 %1020
      %v1055 = vrot.slane %v250, 1
      %v1056 = vrot.slane %v251, 1
      %v1057 = vsel %vm301, %v1055, %v1056
      %v1058 = vrot.slane %v252, 1
      %v1059 = vsel %vm301, %v1056, %v1058
      %1060 = vrot.lane.b32.xlu0 %v314, 28
      %v1061 = vpop.permute.xlu0 %1060
      %1062 = vrot.lane.b32.xlu0 %v316, 28
      %v1063 = vpop.permute.xlu0 %1062
      %1064 = vrot.lane.b32.xlu0 %v319, 28
      %v1065 = vpop.permute.xlu0 %1064
      %1066 = vrot.lane.b32.xlu0 %v321, 28
      %v1067 = vpop.permute.xlu0 %1066
      %1068 = vrot.lane.b32.xlu0 %v324, 28
      %v1069 = vpop.permute.xlu0 %1068
      %1070 = vrot.lane.b32.xlu0 %v326, 28
      %v1071 = vpop.permute.xlu0 %1070
      %1072 = vrot.lane.b32.xlu0 %v329, 28
      %v1073 = vpop.permute.xlu0 %1072
      %1074 = vrot.lane.b32.xlu0 %v331, 28
      %v1075 = vpop.permute.xlu0 %1074
      %1076 = vrot.lane.b32.xlu0 %v334, 28
      %v1077 = vpop.permute.xlu0 %1076
      %1078 = vrot.lane.b32.xlu0 %v336, 28
      %v1079 = vpop.permute.xlu0 %1078
      %1080 = vrot.lane.b32.xlu0 %v339, 28
      %v1081 = vpop.permute.xlu0 %1080
      %1082 = vrot.lane.b32.xlu0 %v341, 28
      %v1083 = vpop.permute.xlu0 %1082
      %1084 = vrot.lane.b32.xlu0 %v344, 28
      %v1085 = vpop.permute.xlu0 %1084
      %1086 = vrot.lane.b32.xlu0 %v346, 28
      %v1087 = vpop.permute.xlu0 %1086
      %1088 = vrot.lane.b32.xlu0 %v349, 28
      %v1089 = vpop.permute.xlu0 %1088
      %1090 = vrot.lane.b32.xlu0 %v351, 28
      %v1091 = vpop.permute.xlu0 %1090
      %1092 = vrot.lane.b32.xlu0 %v354, 28
      %v1093 = vpop.permute.xlu0 %1092
      %1094 = vrot.lane.b32.xlu0 %v356, 28
      %v1095 = vpop.permute.xlu0 %1094
      %1096 = vrot.lane.b32.xlu0 %v359, 28
      %v1097 = vpop.permute.xlu0 %1096
      %1098 = vrot.lane.b32.xlu0 %v361, 28
      %v1099 = vpop.permute.xlu0 %1098
      %1100 = vrot.lane.b32.xlu0 %v364, 28
      %v1101 = vpop.permute.xlu0 %1100
      %1102 = vrot.lane.b32.xlu0 %v366, 28
      %v1103 = vpop.permute.xlu0 %1102
      %1104 = vrot.lane.b32.xlu0 %v369, 28
      %v1105 = vpop.permute.xlu0 %1104
      %1106 = vrot.lane.b32.xlu0 %v371, 28
      %v1107 = vpop.permute.xlu0 %1106
      %1108 = vrot.lane.b32.xlu0 %v374, 28
      %v1109 = vpop.permute.xlu0 %1108
      %1110 = vrot.lane.b32.xlu0 %v376, 28
      %v1111 = vpop.permute.xlu0 %1110
      %1112 = vrot.lane.b32.xlu0 %v379, 28
      %v1113 = vpop.permute.xlu0 %1112
      %1114 = vrot.lane.b32.xlu0 %v381, 28
      %v1115 = vpop.permute.xlu0 %1114
      %1116 = vrot.lane.b32.xlu0 %v756, 28
      %v1117 = vpop.permute.xlu0 %1116
      %1118 = vrot.lane.b32.xlu0 %v758, 28
      %v1119 = vpop.permute.xlu0 %1118
      %1120 = vrot.lane.b32.xlu0 %v1057, 28
      %v1121 = vpop.permute.xlu0 %1120
      %1122 = vrot.lane.b32.xlu0 %v1059, 28
      %v1123 = vpop.permute.xlu0 %1122
      %v1156 = vrot.slane %v250, 2
      %v1157 = vrot.slane %v251, 2
      %v1158 = vsel %vm478, %v1156, %v1157
      %v1159 = vrot.slane %v252, 2
      %v1160 = vsel %vm478, %v1157, %v1159
      %1161 = vrot.lane.b32.xlu0 %v491, 32
      %v1162 = vpop.permute.xlu0 %1161
      %1163 = vrot.lane.b32.xlu0 %v493, 32
      %v1164 = vpop.permute.xlu0 %1163
      %1165 = vrot.lane.b32.xlu0 %v496, 32
      %v1166 = vpop.permute.xlu0 %1165
      %1167 = vrot.lane.b32.xlu0 %v498, 32
      %v1168 = vpop.permute.xlu0 %1167
      %1169 = vrot.lane.b32.xlu0 %v501, 32
      %v1170 = vpop.permute.xlu0 %1169
      %1171 = vrot.lane.b32.xlu0 %v503, 32
      %v1172 = vpop.permute.xlu0 %1171
      %1173 = vrot.lane.b32.xlu0 %v506, 32
      %v1174 = vpop.permute.xlu0 %1173
      %1175 = vrot.lane.b32.xlu0 %v508, 32
      %v1176 = vpop.permute.xlu0 %1175
      %1177 = vrot.lane.b32.xlu0 %v511, 32
      %v1178 = vpop.permute.xlu0 %1177
      %1179 = vrot.lane.b32.xlu0 %v513, 32
      %v1180 = vpop.permute.xlu0 %1179
      %1181 = vrot.lane.b32.xlu0 %v516, 32
      %v1182 = vpop.permute.xlu0 %1181
      %1183 = vrot.lane.b32.xlu0 %v518, 32
      %v1184 = vpop.permute.xlu0 %1183
      %1185 = vrot.lane.b32.xlu0 %v521, 32
      %v1186 = vpop.permute.xlu0 %1185
      %1187 = vrot.lane.b32.xlu0 %v523, 32
      %v1188 = vpop.permute.xlu0 %1187
      %1189 = vrot.lane.b32.xlu0 %v526, 32
      %v1190 = vpop.permute.xlu0 %1189
      %1191 = vrot.lane.b32.xlu0 %v528, 32
      %v1192 = vpop.permute.xlu0 %1191
      %1193 = vrot.lane.b32.xlu0 %v531, 32
      %v1194 = vpop.permute.xlu0 %1193
      %1195 = vrot.lane.b32.xlu0 %v533, 32
      %v1196 = vpop.permute.xlu0 %1195
      %1197 = vrot.lane.b32.xlu0 %v536, 32
      %v1198 = vpop.permute.xlu0 %1197
      %1199 = vrot.lane.b32.xlu0 %v538, 32
      %v1200 = vpop.permute.xlu0 %1199
      %1201 = vrot.lane.b32.xlu0 %v541, 32
      %v1202 = vpop.permute.xlu0 %1201
      %1203 = vrot.lane.b32.xlu0 %v543, 32
      %v1204 = vpop.permute.xlu0 %1203
      %1205 = vrot.lane.b32.xlu0 %v546, 32
      %v1206 = vpop.permute.xlu0 %1205
      %1207 = vrot.lane.b32.xlu0 %v548, 32
      %v1208 = vpop.permute.xlu0 %1207
      %1209 = vrot.lane.b32.xlu0 %v551, 32
      %v1210 = vpop.permute.xlu0 %1209
      %1211 = vrot.lane.b32.xlu0 %v553, 32
      %v1212 = vpop.permute.xlu0 %1211
      %1213 = vrot.lane.b32.xlu0 %v556, 32
      %v1214 = vpop.permute.xlu0 %1213
      %1215 = vrot.lane.b32.xlu0 %v558, 32
      %v1216 = vpop.permute.xlu0 %1215
      %1217 = vrot.lane.b32.xlu0 %v857, 32
      %v1218 = vpop.permute.xlu0 %1217
      %1219 = vrot.lane.b32.xlu0 %v859, 32
      %v1220 = vpop.permute.xlu0 %1219
      %1221 = vrot.lane.b32.xlu0 %v1158, 32
      %v1222 = vpop.permute.xlu0 %1221
      %1223 = vrot.lane.b32.xlu0 %v1160, 32
      %v1224 = vpop.permute.xlu0 %1223
      %vm1257 = vcmask 31744
      %v1258 = vsel %vm1257, %v199, %v383
      %v1259 = vsel %vm1257, %v200, %v385
      %v1260 = vsel %vm1257, %v202, %v387
      %v1261 = vsel %vm1257, %v203, %v389
      %v1262 = vsel %vm1257, %v205, %v391
      %v1263 = vsel %vm1257, %v206, %v393
      %v1264 = vsel %vm1257, %v208, %v395
      %v1265 = vsel %vm1257, %v209, %v397
      %v1266 = vsel %vm1257, %v211, %v399
      %v1267 = vsel %vm1257, %v212, %v401
      %v1268 = vsel %vm1257, %v214, %v403
      %v1269 = vsel %vm1257, %v215, %v405
      %v1270 = vsel %vm1257, %v217, %v407
      %v1271 = vsel %vm1257, %v218, %v409
      %v1272 = vsel %vm1257, %v220, %v411
      %v1273 = vsel %vm1257, %v221, %v413
      %v1274 = vsel %vm1257, %v223, %v415
      %v1275 = vsel %vm1257, %v224, %v417
      %v1276 = vsel %vm1257, %v226, %v419
      %v1277 = vsel %vm1257, %v227, %v421
      %v1278 = vsel %vm1257, %v229, %v423
      %v1279 = vsel %vm1257, %v230, %v425
      %v1280 = vsel %vm1257, %v232, %v427
      %v1281 = vsel %vm1257, %v233, %v429
      %v1282 = vsel %vm1257, %v235, %v431
      %v1283 = vsel %vm1257, %v236, %v433
      %v1284 = vsel %vm1257, %v238, %v435
      %v1285 = vsel %vm1257, %v239, %v437
      %v1286 = vsel %vm1257, %v241, %v439
      %v1287 = vsel %vm1257, %v242, %v441
      %v1288 = vsel %vm1257, %v244, %v443
      %v1289 = vsel %vm1257, %v245, %v445
      %vm1290 = vcmask 64512
      %v1291 = vsel %vm1290, %v1258, %v560
      %v1292 = vsel %vm1290, %v1259, %v562
      %v1293 = vsel %vm1290, %v1260, %v564
      %v1294 = vsel %vm1290, %v1261, %v566
      %v1295 = vsel %vm1290, %v1262, %v568
      %v1296 = vsel %vm1290, %v1263, %v570
      %v1297 = vsel %vm1290, %v1264, %v572
      %v1298 = vsel %vm1290, %v1265, %v574
      %v1299 = vsel %vm1290, %v1266, %v576
      %v1300 = vsel %vm1290, %v1267, %v578
      %v1301 = vsel %vm1290, %v1268, %v580
      %v1302 = vsel %vm1290, %v1269, %v582
      %v1303 = vsel %vm1290, %v1270, %v584
      %v1304 = vsel %vm1290, %v1271, %v586
      %v1305 = vsel %vm1290, %v1272, %v588
      %v1306 = vsel %vm1290, %v1273, %v590
      %v1307 = vsel %vm1290, %v1274, %v592
      %v1308 = vsel %vm1290, %v1275, %v594
      %v1309 = vsel %vm1290, %v1276, %v596
      %v1310 = vsel %vm1290, %v1277, %v598
      %v1311 = vsel %vm1290, %v1278, %v600
      %v1312 = vsel %vm1290, %v1279, %v602
      %v1313 = vsel %vm1290, %v1280, %v604
      %v1314 = vsel %vm1290, %v1281, %v606
      %v1315 = vsel %vm1290, %v1282, %v608
      %v1316 = vsel %vm1290, %v1283, %v610
      %v1317 = vsel %vm1290, %v1284, %v612
      %v1318 = vsel %vm1290, %v1285, %v614
      %v1319 = vsel %vm1290, %v1286, %v616
      %v1320 = vsel %vm1290, %v1287, %v618
      %v1321 = vsel %vm1290, %v1288, %v620
      %v1322 = vsel %vm1290, %v1289, %v622
      %vm1323 = vcmask 97280
      %v1324 = vsel %vm1323, %v1291, %v658
      %v1325 = vsel %vm1323, %v1292, %v660
      %v1326 = vsel %vm1323, %v1293, %v662
      %v1327 = vsel %vm1323, %v1294, %v664
      %v1328 = vsel %vm1323, %v1295, %v666
      %v1329 = vsel %vm1323, %v1296, %v668
      %v1330 = vsel %vm1323, %v1297, %v670
      %v1331 = vsel %vm1323, %v1298, %v672
      %v1332 = vsel %vm1323, %v1299, %v674
      %v1333 = vsel %vm1323, %v1300, %v676
      %v1334 = vsel %vm1323, %v1301, %v678
      %v1335 = vsel %vm1323, %v1302, %v680
      %v1336 = vsel %vm1323, %v1303, %v682
      %v1337 = vsel %vm1323, %v1304, %v684
      %v1338 = vsel %vm1323, %v1305, %v686
      %v1339 = vsel %vm1323, %v1306, %v688
      %v1340 = vsel %vm1323, %v1307, %v690
      %v1341 = vsel %vm1323, %v1308, %v692
      %v1342 = vsel %vm1323, %v1309, %v694
      %v1343 = vsel %vm1323, %v1310, %v696
      %v1344 = vsel %vm1323, %v1311, %v698
      %v1345 = vsel %vm1323, %v1312, %v700
      %v1346 = vsel %vm1323, %v1313, %v702
      %v1347 = vsel %vm1323, %v1314, %v704
      %v1348 = vsel %vm1323, %v1315, %v706
      %v1349 = vsel %vm1323, %v1316, %v708
      %v1350 = vsel %vm1323, %v1317, %v710
      %v1351 = vsel %vm1323, %v1318, %v712
      %v1352 = vsel %vm1323, %v1319, %v714
      %v1353 = vsel %vm1323, %v1320, %v716
      %v1354 = vsel %vm1323, %v1321, %v718
      %v1355 = vsel %vm1323, %v1322, %v720
      %vm1356 = vcmask 130048
      %v1357 = vsel %vm1356, %v1324, %v760
      %v1358 = vsel %vm1356, %v1325, %v762
      %v1359 = vsel %vm1356, %v1326, %v764
      %v1360 = vsel %vm1356, %v1327, %v766
      %v1361 = vsel %vm1356, %v1328, %v768
      %v1362 = vsel %vm1356, %v1329, %v770
      %v1363 = vsel %vm1356, %v1330, %v772
      %v1364 = vsel %vm1356, %v1331, %v774
      %v1365 = vsel %vm1356, %v1332, %v776
      %v1366 = vsel %vm1356, %v1333, %v778
      %v1367 = vsel %vm1356, %v1334, %v780
      %v1368 = vsel %vm1356, %v1335, %v782
      %v1369 = vsel %vm1356, %v1336, %v784
      %v1370 = vsel %vm1356, %v1337, %v786
      %v1371 = vsel %vm1356, %v1338, %v788
      %v1372 = vsel %vm1356, %v1339, %v790
      %v1373 = vsel %vm1356, %v1340, %v792
      %v1374 = vsel %vm1356, %v1341, %v794
      %v1375 = vsel %vm1356, %v1342, %v796
      %v1376 = vsel %vm1356, %v1343, %v798
      %v1377 = vsel %vm1356, %v1344, %v800
      %v1378 = vsel %vm1356, %v1345, %v802
      %v1379 = vsel %vm1356, %v1346, %v804
      %v1380 = vsel %vm1356, %v1347, %v806
      %v1381 = vsel %vm1356, %v1348, %v808
      %v1382 = vsel %vm1356, %v1349, %v810
      %v1383 = vsel %vm1356, %v1350, %v812
      %v1384 = vsel %vm1356, %v1351, %v814
      %v1385 = vsel %vm1356, %v1352, %v816
      %v1386 = vsel %vm1356, %v1353, %v818
      %v1387 = vsel %vm1356, %v1354, %v820
      %v1388 = vsel %vm1356, %v1355, %v822
      %vm1389 = vcmask 162816
      %v1390 = vsel %vm1389, %v1357, %v861
      %v1391 = vsel %vm1389, %v1358, %v863
      %v1392 = vsel %vm1389, %v1359, %v865
      %v1393 = vsel %vm1389, %v1360, %v867
      %v1394 = vsel %vm1389, %v1361, %v869
      %v1395 = vsel %vm1389, %v1362, %v871
      %v1396 = vsel %vm1389, %v1363, %v873
      %v1397 = vsel %vm1389, %v1364, %v875
      %v1398 = vsel %vm1389, %v1365, %v877
      %v1399 = vsel %vm1389, %v1366, %v879
      %v1400 = vsel %vm1389, %v1367, %v881
      %v1401 = vsel %vm1389, %v1368, %v883
      %v1402 = vsel %vm1389, %v1369, %v885
      %v1403 = vsel %vm1389, %v1370, %v887
      %v1404 = vsel %vm1389, %v1371, %v889
      %v1405 = vsel %vm1389, %v1372, %v891
      %v1406 = vsel %vm1389, %v1373, %v893
      %v1407 = vsel %vm1389, %v1374, %v895
      %v1408 = vsel %vm1389, %v1375, %v897
      %v1409 = vsel %vm1389, %v1376, %v899
      %v1410 = vsel %vm1389, %v1377, %v901
      %v1411 = vsel %vm1389, %v1378, %v903
      %v1412 = vsel %vm1389, %v1379, %v905
      %v1413 = vsel %vm1389, %v1380, %v907
      %v1414 = vsel %vm1389, %v1381, %v909
      %v1415 = vsel %vm1389, %v1382, %v911
      %v1416 = vsel %vm1389, %v1383, %v913
      %v1417 = vsel %vm1389, %v1384, %v915
      %v1418 = vsel %vm1389, %v1385, %v917
      %v1419 = vsel %vm1389, %v1386, %v919
      %v1420 = vsel %vm1389, %v1387, %v921
      %v1421 = vsel %vm1389, %v1388, %v923
      %vm1422 = vcmask 195584
      %v1423 = vsel %vm1422, %v1390, %v959
      %v1424 = vsel %vm1422, %v1391, %v961
      %v1425 = vsel %vm1422, %v1392, %v963
      %v1426 = vsel %vm1422, %v1393, %v965
      %v1427 = vsel %vm1422, %v1394, %v967
      %v1428 = vsel %vm1422, %v1395, %v969
      %v1429 = vsel %vm1422, %v1396, %v971
      %v1430 = vsel %vm1422, %v1397, %v973
      %v1431 = vsel %vm1422, %v1398, %v975
      %v1432 = vsel %vm1422, %v1399, %v977
      %v1433 = vsel %vm1422, %v1400, %v979
      %v1434 = vsel %vm1422, %v1401, %v981
      %v1435 = vsel %vm1422, %v1402, %v983
      %v1436 = vsel %vm1422, %v1403, %v985
      %v1437 = vsel %vm1422, %v1404, %v987
      %v1438 = vsel %vm1422, %v1405, %v989
      %v1439 = vsel %vm1422, %v1406, %v991
      %v1440 = vsel %vm1422, %v1407, %v993
      %v1441 = vsel %vm1422, %v1408, %v995
      %v1442 = vsel %vm1422, %v1409, %v997
      %v1443 = vsel %vm1422, %v1410, %v999
      %v1444 = vsel %vm1422, %v1411, %v1001
      %v1445 = vsel %vm1422, %v1412, %v1003
      %v1446 = vsel %vm1422, %v1413, %v1005
      %v1447 = vsel %vm1422, %v1414, %v1007
      %v1448 = vsel %vm1422, %v1415, %v1009
      %v1449 = vsel %vm1422, %v1416, %v1011
      %v1450 = vsel %vm1422, %v1417, %v1013
      %v1451 = vsel %vm1422, %v1418, %v1015
      %v1452 = vsel %vm1422, %v1419, %v1017
      %v1453 = vsel %vm1422, %v1420, %v1019
      %v1454 = vsel %vm1422, %v1421, %v1021
      %vm1455 = vcmask 228352
      %v1456 = vsel %vm1455, %v1423, %v1061
      %v1457 = vsel %vm1455, %v1424, %v1063
      %v1458 = vsel %vm1455, %v1425, %v1065
      %v1459 = vsel %vm1455, %v1426, %v1067
      %v1460 = vsel %vm1455, %v1427, %v1069
      %v1461 = vsel %vm1455, %v1428, %v1071
      %v1462 = vsel %vm1455, %v1429, %v1073
      %v1463 = vsel %vm1455, %v1430, %v1075
      %v1464 = vsel %vm1455, %v1431, %v1077
      %v1465 = vsel %vm1455, %v1432, %v1079
      %v1466 = vsel %vm1455, %v1433, %v1081
      %v1467 = vsel %vm1455, %v1434, %v1083
      %v1468 = vsel %vm1455, %v1435, %v1085
      %v1469 = vsel %vm1455, %v1436, %v1087
      %v1470 = vsel %vm1455, %v1437, %v1089
      %v1471 = vsel %vm1455, %v1438, %v1091
      %v1472 = vsel %vm1455, %v1439, %v1093
      %v1473 = vsel %vm1455, %v1440, %v1095
      %v1474 = vsel %vm1455, %v1441, %v1097
      %v1475 = vsel %vm1455, %v1442, %v1099
      %v1476 = vsel %vm1455, %v1443, %v1101
      %v1477 = vsel %vm1455, %v1444, %v1103
      %v1478 = vsel %vm1455, %v1445, %v1105
      %v1479 = vsel %vm1455, %v1446, %v1107
      %v1480 = vsel %vm1455, %v1447, %v1109
      %v1481 = vsel %vm1455, %v1448, %v1111
      %v1482 = vsel %vm1455, %v1449, %v1113
      %v1483 = vsel %vm1455, %v1450, %v1115
      %v1484 = vsel %vm1455, %v1451, %v1117
      %v1485 = vsel %vm1455, %v1452, %v1119
      %v1486 = vsel %vm1455, %v1453, %v1121
      %v1487 = vsel %vm1455, %v1454, %v1123
      %vm1488 = vcmask 261120
      %v1489 = vsel %vm1488, %v1456, %v1162
      %v1490 = vsel %vm1488, %v1457, %v1164
      %v1491 = vsel %vm1488, %v1458, %v1166
      %v1492 = vsel %vm1488, %v1459, %v1168
      %v1493 = vsel %vm1488, %v1460, %v1170
      %v1494 = vsel %vm1488, %v1461, %v1172
      %v1495 = vsel %vm1488, %v1462, %v1174
      %v1496 = vsel %vm1488, %v1463, %v1176
      %v1497 = vsel %vm1488, %v1464, %v1178
      %v1498 = vsel %vm1488, %v1465, %v1180
      %v1499 = vsel %vm1488, %v1466, %v1182
      %v1500 = vsel %vm1488, %v1467, %v1184
      %v1501 = vsel %vm1488, %v1468, %v1186
      %v1502 = vsel %vm1488, %v1469, %v1188
      %v1503 = vsel %vm1488, %v1470, %v1190
      %v1504 = vsel %vm1488, %v1471, %v1192
      %v1505 = vsel %vm1488, %v1472, %v1194
      %v1506 = vsel %vm1488, %v1473, %v1196
      %v1507 = vsel %vm1488, %v1474, %v1198
      %v1508 = vsel %vm1488, %v1475, %v1200
      %v1509 = vsel %vm1488, %v1476, %v1202
      %v1510 = vsel %vm1488, %v1477, %v1204
      %v1511 = vsel %vm1488, %v1478, %v1206
      %v1512 = vsel %vm1488, %v1479, %v1208
      %v1513 = vsel %vm1488, %v1480, %v1210
      %v1514 = vsel %vm1488, %v1481, %v1212
      %v1515 = vsel %vm1488, %v1482, %v1214
      %v1516 = vsel %vm1488, %v1483, %v1216
      %v1517 = vsel %vm1488, %v1484, %v1218
      %v1518 = vsel %vm1488, %v1485, %v1220
      %v1519 = vsel %vm1488, %v1486, %v1222
      %v1520 = vsel %vm1488, %v1487, %v1224
      %v1521 = vpack.c.bf16 %v1490, %v1489
      %v1522 = vpack.c.bf16 %v1492, %v1491
      %v1523 = vpack.c.bf16 %v1494, %v1493
      %v1524 = vpack.c.bf16 %v1496, %v1495
      %v1525 = vpack.c.bf16 %v1498, %v1497
      %v1526 = vpack.c.bf16 %v1500, %v1499
      %v1527 = vpack.c.bf16 %v1502, %v1501
      %v1528 = vpack.c.bf16 %v1504, %v1503
      %v1529 = vpack.c.bf16 %v1506, %v1505
      %v1530 = vpack.c.bf16 %v1508, %v1507
      %v1531 = vpack.c.bf16 %v1510, %v1509
      %v1532 = vpack.c.bf16 %v1512, %v1511
      %v1533 = vpack.c.bf16 %v1514, %v1513
      %v1534 = vpack.c.bf16 %v1516, %v1515
      %v1535 = vpack.c.bf16 %v1518, %v1517
      %v1536 = vpack.c.bf16 %v1520, %v1519
      %v1537 = vld [vmem:[%s1] sm:$0xf]
      %v1538 = vld [vmem:[%s1 + $0x4] sm:$0xf]
      %v1539 = vld [vmem:[%s1 + $0x8] sm:$0xf]
      %v1540 = vld [vmem:[%s1 + $0xc] sm:$0xf]
      %v1541 = vld [vmem:[%s1 + $0x10] sm:$0x3]
      %v1547 = vunpack.c.l.b16 %v1537
      %v1548 = vunpack.c.l.b16 %v1538
      %v1549 = vunpack.c.l.b16 %v1539
      %v1550 = vunpack.c.l.b16 %v1540
      %v1551 = vunpack.c.l.b16 %v1541
      %v1552 = vpack.c.b16 %v1548, %v1547
      %v1553 = vpack.c.b16 %v1550, %v1549
      %v1554 = vpack.c.b16 %v1551, %v1551
      %vm1557 = vcmask 293888
      %v1559 = vsel %vm1557, %v1521, 0
      %v1562 = vsel %vm1557, %v1522, 0
      %v1565 = vsel %vm1557, %v1523, 0
      %v1568 = vsel %vm1557, %v1524, 0
      %v1571 = vsel %vm1557, %v1525, 0
      %v1574 = vsel %vm1557, %v1526, 0
      %v1577 = vsel %vm1557, %v1527, 0
      %v1580 = vsel %vm1557, %v1528, 0
      %v1583 = vsel %vm1557, %v1529, 0
      %v1586 = vsel %vm1557, %v1530, 0
      %v1589 = vsel %vm1557, %v1531, 0
      %v1592 = vsel %vm1557, %v1532, 0
      %v1595 = vsel %vm1557, %v1533, 0
      %v1598 = vsel %vm1557, %v1534, 0
      %v1601 = vsel %vm1557, %v1535, 0
      %v1604 = vsel %vm1557, %v1536, 0
      %vm1606 = vcmask 1041408
      %v1608 = vsel %vm1606, %v1554, 0
      %1610 = vmatprep.subr.bf16.mxu0 0
      %1611 = vmatpush1.bf16.msra.mxu0 0
      %1612 = vmatprep.subr.bf16.mxu0 0
      %1613 = vmatpush1.bf16.msra.mxu0 0
      %1614 = vmatprep.subr.bf16.mxu0 0
      %1615 = vmatpush1.bf16.msra.mxu0 0
      %1616 = vmatprep.subr.bf16.mxu0 0
      %1617 = vmatpush1.bf16.msra.mxu0 0
      %1618 = vmatprep.subr.bf16.mxu0 0
      %1619 = vmatpush1.bf16.msra.mxu0 0
      %1620 = vmatprep.subr.bf16.mxu0 0
      %1621 = vmatpush1.bf16.msra.mxu0 %v1608
      %1622 = vmatprep.subr.bf16.mxu0 0
      %1623 = vmatpush1.bf16.msra.mxu0 %v1553
      %1624 = vmatprep.subr.bf16.mxu0 0
      %1625 = vmatpush1.bf16.msra.mxu0 %v1552
      %1626 = vmatprep.subr.bf16.mxu0 0
      %1627 = vmatpush2.bf16.msra.mxu0 0
      %1628 = vmatprep.subr.bf16.mxu0 0
      %1629 = vmatpush2.bf16.msra.mxu0 0
      %1630 = vmatprep.subr.bf16.mxu0 0
      %1631 = vmatpush2.bf16.msra.mxu0 0
      %1632 = vmatprep.subr.bf16.mxu0 0
      %1633 = vmatpush2.bf16.msra.mxu0 0
      %1634 = vmatprep.subr.bf16.mxu0 0
      %1635 = vmatpush2.bf16.msra.mxu0 0
      %1636 = vmatprep.subr.bf16.mxu0 0
      %1637 = vmatpush2.bf16.msra.mxu0 0
      %1638 = vmatprep.subr.bf16.mxu0 0
      %1639 = vmatpush2.bf16.msra.mxu0 0
      %1640 = vmatprep.subr.bf16.mxu0 0
      %1641 = vmatpush2.bf16.msra.mxu0 0
      %1642 = vmatprep.mubr.bf16.mxu0 0
      %1643 = vmatmul.mubr.bf16.gmra.mxu0 %v1559
      %v1644 = vpop.f32.mrf.mxu0
      %v1645 = vadd.f32 0.0, %v1644
      %v1646 = vpop.f32.mrf.mxu0
      %v1647 = vpop.f32.mrf.mxu0
      %v1648 = vadd.f32 0.0, %v1647
      %v1649 = vpop.f32.mrf.mxu0
      %1650 = vmatprep.mubr.bf16.mxu0 0
      %1651 = vmatmul.mubr.bf16.gmra.mxu0 %v1562
      %v1652 = vpop.f32.mrf.mxu0
      %v1653 = vadd.f32 0.0, %v1652
      %v1654 = vpop.f32.mrf.mxu0
      %v1655 = vpop.f32.mrf.mxu0
      %v1656 = vadd.f32 0.0, %v1655
      %v1657 = vpop.f32.mrf.mxu0
      %1658 = vmatprep.mubr.bf16.mxu0 0
      %1659 = vmatmul.mubr.bf16.gmra.mxu0 %v1565
      %v1660 = vpop.f32.mrf.mxu0
      %v1661 = vadd.f32 0.0, %v1660
      %v1662 = vpop.f32.mrf.mxu0
      %v1663 = vpop.f32.mrf.mxu0
      %v1664 = vadd.f32 0.0, %v1663
      %v1665 = vpop.f32.mrf.mxu0
      %1666 = vmatprep.mubr.bf16.mxu0 0
      %1667 = vmatmul.mubr.bf16.gmra.mxu0 %v1568
      %v1668 = vpop.f32.mrf.mxu0
      %v1669 = vadd.f32 0.0, %v1668
      %v1670 = vpop.f32.mrf.mxu0
      %v1671 = vpop.f32.mrf.mxu0
      %v1672 = vadd.f32 0.0, %v1671
      %v1673 = vpop.f32.mrf.mxu0
      %1674 = vmatprep.mubr.bf16.mxu0 0
      %1675 = vmatmul.mubr.bf16.gmra.mxu0 %v1571
      %v1676 = vpop.f32.mrf.mxu0
      %v1677 = vadd.f32 0.0, %v1676
      %v1678 = vpop.f32.mrf.mxu0
      %v1679 = vpop.f32.mrf.mxu0
      %v1680 = vadd.f32 0.0, %v1679
      %v1681 = vpop.f32.mrf.mxu0
      %1682 = vmatprep.mubr.bf16.mxu0 0
      %1683 = vmatmul.mubr.bf16.gmra.mxu0 %v1574
      %v1684 = vpop.f32.mrf.mxu0
      %v1685 = vadd.f32 0.0, %v1684
      %v1686 = vpop.f32.mrf.mxu0
      %v1687 = vpop.f32.mrf.mxu0
      %v1688 = vadd.f32 0.0, %v1687
      %v1689 = vpop.f32.mrf.mxu0
      %1690 = vmatprep.mubr.bf16.mxu0 0
      %1691 = vmatmul.mubr.bf16.gmra.mxu0 %v1577
      %v1692 = vpop.f32.mrf.mxu0
      %v1693 = vadd.f32 0.0, %v1692
      %v1694 = vpop.f32.mrf.mxu0
      %v1695 = vpop.f32.mrf.mxu0
      %v1696 = vadd.f32 0.0, %v1695
      %v1697 = vpop.f32.mrf.mxu0
      %1698 = vmatprep.mubr.bf16.mxu0 0
      %1699 = vmatmul.mubr.bf16.gmra.mxu0 %v1580
      %v1700 = vpop.f32.mrf.mxu0
      %v1701 = vadd.f32 0.0, %v1700
      %v1702 = vpop.f32.mrf.mxu0
      %v1703 = vpop.f32.mrf.mxu0
      %v1704 = vadd.f32 0.0, %v1703
      %v1705 = vpop.f32.mrf.mxu0
      %1706 = vmatprep.mubr.bf16.mxu0 0
      %1707 = vmatmul.mubr.bf16.gmra.mxu0 %v1583
      %v1708 = vpop.f32.mrf.mxu0
      %v1709 = vadd.f32 0.0, %v1708
      %v1710 = vpop.f32.mrf.mxu0
      %v1711 = vpop.f32.mrf.mxu0
      %v1712 = vadd.f32 0.0, %v1711
      %v1713 = vpop.f32.mrf.mxu0
      %1714 = vmatprep.mubr.bf16.mxu0 0
      %1715 = vmatmul.mubr.bf16.gmra.mxu0 %v1586
      %v1716 = vpop.f32.mrf.mxu0
      %v1717 = vadd.f32 0.0, %v1716
      %v1718 = vpop.f32.mrf.mxu0
      %v1719 = vpop.f32.mrf.mxu0
      %v1720 = vadd.f32 0.0, %v1719
      %v1721 = vpop.f32.mrf.mxu0
      %1722 = vmatprep.mubr.bf16.mxu0 0
      %1723 = vmatmul.mubr.bf16.gmra.mxu0 %v1589
      %v1724 = vpop.f32.mrf.mxu0
      %v1725 = vadd.f32 0.0, %v1724
      %v1726 = vpop.f32.mrf.mxu0
      %v1727 = vpop.f32.mrf.mxu0
      %v1728 = vadd.f32 0.0, %v1727
      %v1729 = vpop.f32.mrf.mxu0
      %1730 = vmatprep.mubr.bf16.mxu0 0
      %1731 = vmatmul.mubr.bf16.gmra.mxu0 %v1592
      %v1732 = vpop.f32.mrf.mxu0
      %v1733 = vadd.f32 0.0, %v1732
      %v1734 = vpop.f32.mrf.mxu0
      %v1735 = vpop.f32.mrf.mxu0
      %v1736 = vadd.f32 0.0, %v1735
      %v1737 = vpop.f32.mrf.mxu0
      %1738 = vmatprep.mubr.bf16.mxu0 0
      %1739 = vmatmul.mubr.bf16.gmra.mxu0 %v1595
      %v1740 = vpop.f32.mrf.mxu0
      %v1741 = vadd.f32 0.0, %v1740
      %v1742 = vpop.f32.mrf.mxu0
      %v1743 = vpop.f32.mrf.mxu0
      %v1744 = vadd.f32 0.0, %v1743
      %v1745 = vpop.f32.mrf.mxu0
      %1746 = vmatprep.mubr.bf16.mxu0 0
      %1747 = vmatmul.mubr.bf16.gmra.mxu0 %v1598
      %v1748 = vpop.f32.mrf.mxu0
      %v1749 = vadd.f32 0.0, %v1748
      %v1750 = vpop.f32.mrf.mxu0
      %v1751 = vpop.f32.mrf.mxu0
      %v1752 = vadd.f32 0.0, %v1751
      %v1753 = vpop.f32.mrf.mxu0
      %1754 = vmatprep.mubr.bf16.mxu0 0
      %1755 = vmatmul.mubr.bf16.gmra.mxu0 %v1601
      %v1756 = vpop.f32.mrf.mxu0
      %v1757 = vadd.f32 0.0, %v1756
      %v1758 = vpop.f32.mrf.mxu0
      %v1759 = vpop.f32.mrf.mxu0
      %v1760 = vadd.f32 0.0, %v1759
      %v1761 = vpop.f32.mrf.mxu0
      %1762 = vmatprep.mubr.bf16.mxu0 0
      %1763 = vmatmul.mubr.bf16.gmra.mxu0 %v1604
      %v1764 = vpop.f32.mrf.mxu0
      %v1765 = vadd.f32 0.0, %v1764
      %v1766 = vpop.f32.mrf.mxu0
      %v1767 = vpop.f32.mrf.mxu0
      %v1768 = vadd.f32 0.0, %v1767
      %v1769 = vpop.f32.mrf.mxu0
      %1770 = vdwg.mxu0
      %v1771 = vld [vmem:[%s2] sm:$0x1]
      %v1773 = vlaneseq
      %v1774 = vshrl.u32 %v1773, 7
      %v1775 = vsub.s32 0, %v1774
      %v1776 = vrot.slane %v1771, %v1775
      %v1778 = vmul.f32 %v1645, %v1776
      %v1779 = vmul.f32 %v1648, %v1776
      %v1780 = vmul.f32 %v1653, %v1776
      %v1781 = vmul.f32 %v1656, %v1776
      %v1782 = vmul.f32 %v1661, %v1776
      %v1783 = vmul.f32 %v1664, %v1776
      %v1784 = vmul.f32 %v1669, %v1776
      %v1785 = vmul.f32 %v1672, %v1776
      %v1786 = vmul.f32 %v1677, %v1776
      %v1787 = vmul.f32 %v1680, %v1776
      %v1788 = vmul.f32 %v1685, %v1776
      %v1789 = vmul.f32 %v1688, %v1776
      %v1790 = vmul.f32 %v1693, %v1776
      %v1791 = vmul.f32 %v1696, %v1776
      %v1792 = vmul.f32 %v1701, %v1776
      %v1793 = vmul.f32 %v1704, %v1776
      %v1794 = vmul.f32 %v1709, %v1776
      %v1795 = vmul.f32 %v1712, %v1776
      %v1796 = vmul.f32 %v1717, %v1776
      %v1797 = vmul.f32 %v1720, %v1776
      %v1798 = vmul.f32 %v1725, %v1776
      %v1799 = vmul.f32 %v1728, %v1776
      %v1800 = vmul.f32 %v1733, %v1776
      %v1801 = vmul.f32 %v1736, %v1776
      %v1802 = vmul.f32 %v1741, %v1776
      %v1803 = vmul.f32 %v1744, %v1776
      %v1804 = vmul.f32 %v1749, %v1776
      %v1805 = vmul.f32 %v1752, %v1776
      %v1806 = vmul.f32 %v1757, %v1776
      %v1807 = vmul.f32 %v1760, %v1776
      %v1808 = vmul.f32 %v1765, %v1776
      %v1809 = vmul.f32 %v1768, %v1776
      %v1810 = vld [vmem:[%s3] sm:$0x1]
      %v1812 = vlaneseq
      %v1813 = vshrl.u32 %v1812, 7
      %v1814 = vsub.s32 0, %v1813
      %v1815 = vrot.slane %v1810, %v1814
      %v1817 = vadd.f32 %v1778, %v1815
      %v1818 = vadd.f32 %v1779, %v1815
      %v1819 = vadd.f32 %v1780, %v1815
      %v1820 = vadd.f32 %v1781, %v1815
      %v1821 = vadd.f32 %v1782, %v1815
      %v1822 = vadd.f32 %v1783, %v1815
      %v1823 = vadd.f32 %v1784, %v1815
      %v1824 = vadd.f32 %v1785, %v1815
      %v1825 = vadd.f32 %v1786, %v1815
      %v1826 = vadd.f32 %v1787, %v1815
      %v1827 = vadd.f32 %v1788, %v1815
      %v1828 = vadd.f32 %v1789, %v1815
      %v1829 = vadd.f32 %v1790, %v1815
      %v1830 = vadd.f32 %v1791, %v1815
      %v1831 = vadd.f32 %v1792, %v1815
      %v1832 = vadd.f32 %v1793, %v1815
      %v1833 = vadd.f32 %v1794, %v1815
      %v1834 = vadd.f32 %v1795, %v1815
      %v1835 = vadd.f32 %v1796, %v1815
      %v1836 = vadd.f32 %v1797, %v1815
      %v1837 = vadd.f32 %v1798, %v1815
      %v1838 = vadd.f32 %v1799, %v1815
      %v1839 = vadd.f32 %v1800, %v1815
      %v1840 = vadd.f32 %v1801, %v1815
      %v1841 = vadd.f32 %v1802, %v1815
      %v1842 = vadd.f32 %v1803, %v1815
      %v1843 = vadd.f32 %v1804, %v1815
      %v1844 = vadd.f32 %v1805, %v1815
      %v1845 = vadd.f32 %v1806, %v1815
      %v1846 = vadd.f32 %v1807, %v1815
      %v1847 = vadd.f32 %v1808, %v1815
      %v1848 = vadd.f32 %v1809, %v1815
      %v1849 = vmax.f32 %v1817, 0.0
      %v1850 = vmax.f32 %v1818, 0.0
      %v1851 = vmax.f32 %v1819, 0.0
      %v1852 = vmax.f32 %v1820, 0.0
      %v1853 = vmax.f32 %v1821, 0.0
      %v1854 = vmax.f32 %v1822, 0.0
      %v1855 = vmax.f32 %v1823, 0.0
      %v1856 = vmax.f32 %v1824, 0.0
      %v1857 = vmax.f32 %v1825, 0.0
      %v1858 = vmax.f32 %v1826, 0.0
      %v1859 = vmax.f32 %v1827, 0.0
      %v1860 = vmax.f32 %v1828, 0.0
      %v1861 = vmax.f32 %v1829, 0.0
      %v1862 = vmax.f32 %v1830, 0.0
      %v1863 = vmax.f32 %v1831, 0.0
      %v1864 = vmax.f32 %v1832, 0.0
      %v1865 = vmax.f32 %v1833, 0.0
      %v1866 = vmax.f32 %v1834, 0.0
      %v1867 = vmax.f32 %v1835, 0.0
      %v1868 = vmax.f32 %v1836, 0.0
      %v1869 = vmax.f32 %v1837, 0.0
      %v1870 = vmax.f32 %v1838, 0.0
      %v1871 = vmax.f32 %v1839, 0.0
      %v1872 = vmax.f32 %v1840, 0.0
      %v1873 = vmax.f32 %v1841, 0.0
      %v1874 = vmax.f32 %v1842, 0.0
      %v1875 = vmax.f32 %v1843, 0.0
      %v1876 = vmax.f32 %v1844, 0.0
      %v1877 = vmax.f32 %v1845, 0.0
      %v1878 = vmax.f32 %v1846, 0.0
      %v1879 = vmax.f32 %v1847, 0.0
      %v1880 = vmax.f32 %v1848, 0.0
      %1881 = vst [vmem:[%s197] sm:$0xff] %v1849
      %1882 = vst [vmem:[%s197 + $0x8] sm:$0xff] %v1850
      %1883 = vst [vmem:[%s197 + $0x10] sm:$0xff] %v1851
      %1884 = vst [vmem:[%s197 + $0x18] sm:$0xff] %v1852
      %1885 = vst [vmem:[%s197 + $0x20] sm:$0xff] %v1853
      %1886 = vst [vmem:[%s197 + $0x28] sm:$0xff] %v1854
      %1887 = vst [vmem:[%s197 + $0x30] sm:$0xff] %v1855
      %1888 = vst [vmem:[%s197 + $0x38] sm:$0xff] %v1856
      %1889 = vst [vmem:[%s197 + $0x40] sm:$0xff] %v1857
      %1890 = vst [vmem:[%s197 + $0x48] sm:$0xff] %v1858
      %1891 = vst [vmem:[%s197 + $0x50] sm:$0xff] %v1859
      %1892 = vst [vmem:[%s197 + $0x58] sm:$0xff] %v1860
      %1893 = vst [vmem:[%s197 + $0x60] sm:$0xff] %v1861
      %1894 = vst [vmem:[%s197 + $0x68] sm:$0xff] %v1862
      %1895 = vst [vmem:[%s197 + $0x70] sm:$0xff] %v1863
      %1896 = vst [vmem:[%s197 + $0x78] sm:$0xff] %v1864
      %1897 = vst [vmem:[%s197 + $0x80] sm:$0xff] %v1865
      %1898 = vst [vmem:[%s197 + $0x88] sm:$0xff] %v1866
      %1899 = vst [vmem:[%s197 + $0x90] sm:$0xff] %v1867
      %1900 = vst [vmem:[%s197 + $0x98] sm:$0xff] %v1868
      %1901 = vst [vmem:[%s197 + $0xa0] sm:$0xff] %v1869
      %1902 = vst [vmem:[%s197 + $0xa8] sm:$0xff] %v1870
      %1903 = vst [vmem:[%s197 + $0xb0] sm:$0xff] %v1871
      %1904 = vst [vmem:[%s197 + $0xb8] sm:$0xff] %v1872
      %1905 = vst [vmem:[%s197 + $0xc0] sm:$0xff] %v1873
      %1906 = vst [vmem:[%s197 + $0xc8] sm:$0xff] %v1874
      %1907 = vst [vmem:[%s197 + $0xd0] sm:$0xff] %v1875
      %1908 = vst [vmem:[%s197 + $0xd8] sm:$0xff] %v1876
      %1909 = vst [vmem:[%s197 + $0xe0] sm:$0xff] %v1877
      %1910 = vst [vmem:[%s197 + $0xe8] sm:$0xff] %v1878
      %1911 = vst [vmem:[%s197 + $0xf0] sm:$0xff] %v1879
      %1912 = vst [vmem:[%s197 + $0xf8] sm:$0xff] %v1880
      %p1913 = scmp.lt.s32.totalorder %s15, 1
      %s1914 = scalar_select %p1913, %s15, 1
      %s1915 = smul.addr %s1914, 32
      %s1916 = smul.addr %s1915, 8
      %s1917 = scalar_lea.vmem %s4, %s1916
      // Predicated region
      $region37: #{conv_block_forward.1} parent=35 // pred_check
        %p1918 = pneg %p122
      $region38: #{conv_block_forward.1} parent=35 // pred_check_branch
        %1920 = sbr.rel (%p1918) target = $region40
      $region39: #{conv_block_forward.1} parent=35 // pred_region
        _
      $region40: #{conv_block_forward.1} parent=35 // pred_fallthru
        _
    $region36: #{conv_block_forward.1} parent=5 // pred_fallthru
      _
    %p1921 = scmp.le.s32.totalorder 2, %s10
    // Predicated region
    $region41: #{conv_block_forward.1} parent=5 // pred_check
      %p1922 = pneg %p1921
    $region42: #{conv_block_forward.1} parent=5 // pred_check_branch
      %1924 = sbr.rel (%p1922) target = $region44
    $region43: #{conv_block_forward.1} parent=5 // pred_region
      %s1925 = ssub.s32 %s10, 2
      // Predicated region
      $region45: #{conv_block_forward.1} parent=43 // pred_check
        %p1926 = pneg %p128
      $region46: #{conv_block_forward.1} parent=43 // pred_check_branch
        %1928 = sbr.rel (%p1926) target = $region48
      $region47: #{conv_block_forward.1} parent=43 // pred_region
        %p1929 = scmp.lt.s32.totalorder %s16, 1
        %s1930 = scalar_select %p1929, %s16, 1
        %s1931 = smul.addr %s1930, 32
        %s1932 = smul.addr %s1931, 8
        %s1933 = scalar_lea.vmem %s4, %s1932
      $region48: #{conv_block_forward.1} parent=43 // pred_fallthru
        _
    $region44: #{conv_block_forward.1} parent=5 // pred_fallthru
      _
  $region6: #{conv_block_forward.1} parent=0 // loop_footer
    %s14 = sadd.s32 1, %s10
  $region7: #{conv_block_forward.1} parent=0 // loop_footer_branch
    %9 = sbr.rel target = $region3
  $region8: #{conv_block_forward.1} parent=0 // loop_exit
    _

</llo_original>
